<compile_context>
chip_gen: v6e
topology: v6e:2x2x1
jax: 0.10.0
libtpu: 0.0.40
codegen_flags: <defaults>
</compile_context>

<pallas_src>
import functools
import math

import jax
import jax.numpy as jnp
import numpy as np
from jax import lax
from jax.experimental import pallas as pl
from jax.experimental.pallas import tpu as pltpu


# Row order of the packed per-layer (9, D) bias / LayerNorm slab.
_VEC_ROWS = ("bq_scaled", "bk", "bv", "bo", "g1", "be1", "b2", "g2", "be2")


def _round_up(x, m):
    return (x + m - 1) // m * m


def _layernorm(x, gamma, beta, eps=1e-5):
    mu = jnp.mean(x, axis=-1, keepdims=True)
    var = jnp.mean(jnp.square(x - mu), axis=-1, keepdims=True)
    return (x - mu) * jax.lax.rsqrt(var + eps) * gamma + beta


# ----------------------------------------------------------------------------
# Fused kernel: grid = (B, L); one grid step = one encoder layer for one batch
# element.  The activation is carried across the layer axis in VMEM scratch.
# ----------------------------------------------------------------------------
def fused_encoder_kernel(src_ref, pos_ref, maskb_ref,
                         wqk_ref, wv_ref, wo_ref, w1_ref, w2_ref,
                         vec_ref, b1_ref,
                         out_ref,
                         carry_ref, qh_ref, kh_ref, vwo_ref,
                         *, nhead, q_chunk, n_chunks):
    l = pl.program_id(1)
    num_layers = pl.num_programs(1)

    # Initialize the carry with the (already transposed, padded) source.
    @pl.when(l == 0)
    def _():
        carry_ref[...] = src_ref[0].astype(jnp.float32)

    x = carry_ref[...]                          # (Sp, D) f32 — layer input
    pos = pos_ref[0].astype(jnp.float32)        # (Sp, D)
    mask_bias = maskb_ref[0]                    # (1, Sp): 0 or -1e9 (key padding)

    Sp, D = x.shape
    hd = D // nhead

    # Packed small vectors: one slab -> one DMA instead of ten.
    vd = vec_ref[0]                             # (9, D) f32
    bq, bk, bv, bo = vd[0:1], vd[1:2], vd[2:3], vd[3:4]
    g1, be1, b2 = vd[4:5], vd[5:6], vd[6:7]
    g2, be2 = vd[7:8], vd[8:9]
    b1 = b1_ref[0]                              # (1, F) f32

    # ---- projections: bf16 MXU matmuls, f32 accumulation ---------------------
    x_bf = x.astype(jnp.bfloat16)
    xp_bf = (x + pos).astype(jnp.bfloat16)      # q = k = src + pos ; v = src

    qk = jnp.dot(xp_bf, wqk_ref[0], preferred_element_type=jnp.float32)  # (Sp, 2D)
    q = qk[:, :D] + bq                          # 1/sqrt(hd) already folded in
    k = qk[:, D:] + bk
    v = jnp.dot(x_bf, wv_ref[0], preferred_element_type=jnp.float32) + bv

    wo_h = wo_ref[0]                            # (H, hd, D) bf16 (pre-transposed)

    # Head split: direct per-head stores into scratch (no stack / concat).
    # V is pre-folded with its out-projection slice so the per-chunk attention
    # output matmuls contract over the full padded key extent (K = Sp, N = D).
    for h in range(nhead):
        sl = slice(h * hd, (h + 1) * hd)
        qh_ref[h] = q[:, sl].astype(jnp.bfloat16)
        kh_ref[h] = k[:, sl].astype(jnp.bfloat16)
        vwo_ref[h] = jnp.dot(v[:, sl].astype(jnp.bfloat16), wo_h[h],
                             preferred_element_type=jnp.float32
                             ).astype(jnp.bfloat16)

    # ---- attention + out-proj + LN1 + FFN + LN2, fori over query chunks ------
    def chunk_body(ci, _):
        q0 = pl.multiple_of(ci * q_chunk, q_chunk)
        q_c = qh_ref[:, pl.ds(q0, q_chunk), :]               # (H, TQ, hd) bf16
        kh = kh_ref[...]                                      # (H, Sp, hd) bf16

        s = jnp.einsum("hqd,hkd->hqk", q_c, kh,
                       preferred_element_type=jnp.float32)    # (H, TQ, Sp)
        s = s + mask_bias                                     # key-padding bias
        s = s - jnp.max(s, axis=-1, keepdims=True)
        p = jnp.exp(s)
        p = p * pl.reciprocal(jnp.sum(p, axis=-1, keepdims=True), approx=True)
        p_bf = p.astype(jnp.bfloat16)

        # attention output + out-projection: sum_h P_h @ (V_h Wo_h)
        o = jnp.dot(p_bf[0], vwo_ref[0], preferred_element_type=jnp.float32)
        for h in range(1, nhead):
            o = o + jnp.dot(p_bf[h], vwo_ref[h],
                            preferred_element_type=jnp.float32)
        o = o + bo                                            # (TQ, D)

        # residual + LayerNorm1 (dropout == identity in eval)
        x_c = carry_ref[pl.ds(q0, q_chunk), :]
        x1 = _layernorm(x_c + o, g1, be1)

        # FFN: linear1 -> ReLU -> linear2
        h1 = jnp.dot(x1.astype(jnp.bfloat16), w1_ref[0],
                     preferred_element_type=jnp.float32) + b1
        h1 = jnp.maximum(h1, 0.0)
        h2 = jnp.dot(h1.astype(jnp.bfloat16), w2_ref[0],
                     preferred_element_type=jnp.float32) + b2

        # residual + LayerNorm2 -> carry for the next layer
        x2 = _layernorm(x1 + h2, g2, be2)
        carry_ref[pl.ds(q0, q_chunk), :] = x2
        return 0

    lax.fori_loop(0, n_chunks, chunk_body, 0)

    @pl.when(l == num_layers - 1)
    def _():
        out_ref[0] = carry_ref[...].astype(out_ref.dtype)


# ----------------------------------------------------------------------------
# pallas_call wrapper
# ----------------------------------------------------------------------------
def _pick_vmem_limit():
    default = 48 * 1024 * 1024
    try:
        info = pltpu.get_tpu_info()
        cap = getattr(info, "vmem_capacity_bytes", None)
        if cap:
            return int(min(default, cap // 2))   # ~32 MiB on v7x, 48 MiB elsewhere
    except Exception:
        pass
    return default


def transformer_encoder_pallas(x, pos, mask_bias, packed, nhead, q_chunk, n_chunks):
    """x, pos: (B, Sp, D) f32; mask_bias: (B, 1, Sp) f32; packed: stacked params."""
    B, Sp, D = x.shape
    L = packed["wqk"].shape[0]
    F = packed["w1"].shape[2]
    hd = D // nhead

    per_batch = pl.BlockSpec((1, Sp, D), lambda b, l: (b, 0, 0))

    def per_layer(*shape):
        nz = len(shape)
        return pl.BlockSpec((1,) + shape, lambda b, l, nz=nz: (l,) + (0,) * nz)

    kernel = functools.partial(fused_encoder_kernel, nhead=nhead,
                               q_chunk=q_chunk, n_chunks=n_chunks)

    return pl.pallas_call(
        kernel,
        out_shape=jax.ShapeDtypeStruct((B, Sp, D), x.dtype),
        grid=(B, L),
        in_specs=[
            per_batch,                                         # src
            per_batch,                                         # pos
            pl.BlockSpec((1, 1, Sp), lambda b, l: (b, 0, 0)),  # key-padding bias
            per_layer(D, 2 * D),                               # [wq*scale | wk]^T bf16
            per_layer(D, D),                                   # wv^T bf16
            per_layer(nhead, hd, D),                           # wo^T per head bf16
            per_layer(D, F),                                   # w1^T bf16
            per_layer(F, D),                                   # w2^T bf16
            per_layer(len(_VEC_ROWS), D),                      # packed biases / LN
            per_layer(1, F),                                   # b1
        ],
        out_specs=per_batch,
        scratch_shapes=[
            pltpu.VMEM((Sp, D), jnp.float32),                  # activation carry
            pltpu.VMEM((nhead, Sp, hd), jnp.bfloat16),         # q heads
            pltpu.VMEM((nhead, Sp, hd), jnp.bfloat16),         # k heads
            pltpu.VMEM((nhead, Sp, D), jnp.bfloat16),          # V_h @ Wo_h
        ],
        compiler_params=pltpu.CompilerParams(
            dimension_semantics=("parallel", "arbitrary"),
            vmem_limit_bytes=_pick_vmem_limit(),
        ),
    )(x, pos, mask_bias,
      packed["wqk"], packed["wv"], packed["wo"],
      packed["w1"], packed["w2"], packed["vec"], packed["b1"])


# ----------------------------------------------------------------------------
# Parameter init (xavier_uniform on matrices, zeros on biases, ones/zeros LN)
# ----------------------------------------------------------------------------
def xavier_uniform(key, shape):
    fan_out, fan_in = shape
    bound = math.sqrt(6.0 / (fan_in + fan_out))
    return jax.random.uniform(key, shape, jnp.float32, minval=-bound, maxval=bound)


def init_transformer_params(key, d_model, dim_ff, num_layers):
    params = []
    for _ in range(num_layers):
        key, k0, k1, k2, k3 = jax.random.split(key, 5)
        in_proj = xavier_uniform(k0, (3 * d_model, d_model))   # nn.MultiheadAttention
        wq, wk, wv = jnp.split(in_proj, 3, axis=0)
        params.append(dict(
            wq=wq, wk=wk, wv=wv,
            bq=jnp.zeros((1, d_model)), bk=jnp.zeros((1, d_model)),
            bv=jnp.zeros((1, d_model)),
            wo=xavier_uniform(k1, (d_model, d_model)), bo=jnp.zeros((1, d_model)),
            g1=jnp.ones((1, d_model)), be1=jnp.zeros((1, d_model)),
            w1=xavier_uniform(k2, (dim_ff, d_model)), b1=jnp.zeros((1, dim_ff)),
            w2=xavier_uniform(k3, (d_model, dim_ff)), b2=jnp.zeros((1, d_model)),
            g2=jnp.ones((1, d_model)), be2=jnp.zeros((1, d_model)),
        ))
    return params


def pack_params_for_kernel(params, nhead):
    """Stack per-layer params along L, pre-transpose weights (x @ W layout),
    fuse Wq/Wk, fold the 1/sqrt(hd) scale into wq/bq, cast matmul weights to
    bf16, pack all (1, D) vectors into one slab."""
    d_model = params[0]["wq"].shape[0]
    hd = d_model // nhead
    scale = 1.0 / math.sqrt(hd)

    def stack(fn, dtype):
        return jnp.stack([fn(p) for p in params], axis=0).astype(dtype)

    return dict(
        wqk=stack(lambda p: jnp.concatenate([p["wq"].T * scale, p["wk"].T], axis=1),
                  jnp.bfloat16),                                            # (L, D, 2D)
        wv=stack(lambda p: p["wv"].T, jnp.bfloat16),                        # (L, D, D)
        wo=stack(lambda p: p["wo"].T.reshape(nhead, hd, d_model), jnp.bfloat16),
        w1=stack(lambda p: p["w1"].T, jnp.bfloat16),                        # (L, D, F)
        w2=stack(lambda p: p["w2"].T, jnp.bfloat16),                        # (L, F, D)
        vec=stack(lambda p: jnp.concatenate(
            [p["bq"] * scale, p["bk"], p["bv"], p["bo"],
             p["g1"], p["be1"], p["b2"], p["g2"], p["be2"]], axis=0),
            jnp.float32),                                                   # (L, 9, D)
        b1=stack(lambda p: p["b1"], jnp.float32),                           # (L, 1, F)
    )


# ----------------------------------------------------------------------------
# Module forward (matches Transformer.forward: encoder only, returns (B, D, S))
# ----------------------------------------------------------------------------
def transformer_forward(params, src, mask, query_embed, pos_embed, nhead):
    # src: (bs, d_model, spb); mask: (bs, spb) bool (True = padded); pos like src.
    # query_embed is accepted but unused — the reference forward only runs the
    # encoder and returns memory.permute(1, 2, 0).
    bs, d, spb = src.shape
    x = jnp.transpose(src, (0, 2, 1)).astype(jnp.float32)                   # (B, S, D)
    if pos_embed is not None:
        pos = jnp.transpose(pos_embed, (0, 2, 1)).astype(jnp.float32)
    else:
        pos = jnp.zeros_like(x)
    mask_bias = jnp.where(mask, -1e9, 0.0).astype(jnp.float32).reshape(bs, 1, spb)

    # Pad S so query chunks are uniform (and lane-dense for long sequences).
    # Pad keys get -1e9 bias; pad query rows are dropped after the kernel.
    if spb > 128:
        q_chunk = 128
    else:
        q_chunk = _round_up(spb, 8)
    sp = _round_up(spb, q_chunk)
    n_chunks = sp // q_chunk
    pad = sp - spb
    if pad:
        x = jnp.pad(x, ((0, 0), (0, pad), (0, 0)))
        pos = jnp.pad(pos, ((0, 0), (0, pad), (0, 0)))
        mask_bias = jnp.pad(mask_bias, ((0, 0), (0, 0), (0, pad)),
                            constant_values=-1e9)

    packed = pack_params_for_kernel(params, nhead)
    y = transformer_encoder_pallas(x, pos, mask_bias, packed, nhead,
                                   q_chunk, n_chunks)
    return jnp.transpose(y[:, :spb, :], (0, 2, 1))                          # (B, D, S)


# ----------------------------------------------------------------------------
# Pure-JAX f32 reference for a sanity check
# ----------------------------------------------------------------------------
def reference_forward(params, src, mask, pos_embed, nhead):
    x = jnp.transpose(src, (0, 2, 1)).astype(jnp.float32)
    pos = jnp.transpose(pos_embed, (0, 2, 1)).astype(jnp.float32)
    bias = jnp.where(mask, -1e9, 0.0)[:, None, None, :]                     # (B,1,1,S)
    B, S, D = x.shape
    hd = D // nhead
    for p in params:
        qk_in = x + pos
        q = qk_in @ p["wq"].T + p["bq"]
        k = qk_in @ p["wk"].T + p["bk"]
        v = x @ p["wv"].T + p["bv"]
        qh = q.reshape(B, S, nhead, hd).transpose(0, 2, 1, 3)
        kh = k.reshape(B, S, nhead, hd).transpose(0, 2, 1, 3)
        vh = v.reshape(B, S, nhead, hd).transpose(0, 2, 1, 3)
        s = (qh @ kh.transpose(0, 1, 3, 2)) / math.sqrt(hd) + bias
        a = jax.nn.softmax(s, axis=-1)
        o = (a @ vh).transpose(0, 2, 1, 3).reshape(B, S, D)
        o = o @ p["wo"].T + p["bo"]
        x1 = x + o
        x1 = (x1 - x1.mean(-1, keepdims=True)) * jax.lax.rsqrt(
            x1.var(-1, keepdims=True) + 1e-5) * p["g1"] + p["be1"]
        h = jnp.maximum(x1 @ p["w1"].T + p["b1"], 0.0) @ p["w2"].T + p["b2"]
        x2 = x1 + h
        x = (x2 - x2.mean(-1, keepdims=True)) * jax.lax.rsqrt(
            x2.var(-1, keepdims=True) + 1e-5) * p["g2"] + p["be2"]
    return jnp.transpose(x, (0, 2, 1))


if __name__ == "__main__":
    NHEAD, FF, LAYERS = 4, 64, 2
    NUM_QUERIES = 4
    key = jax.random.PRNGKey(0)

    # First case matches the original small test; second exercises the S padding path.
    for (B, D, S) in [(2, 32, 8), (2, 32, 12)]:
        key, kp, ks, kq, kpe = jax.random.split(key, 5)
        params = init_transformer_params(kp, D, FF, LAYERS)

        src = jax.random.normal(ks, (B, D, S), jnp.float32)       # (bs, d_model, spb)
        pos_embed = jax.random.normal(kpe, (B, D, S), jnp.float32)
        query_embed = jax.random.normal(kq, (NUM_QUERIES, D), jnp.float32)  # unused
        # key padding mask: True = ignore. Pad last 2 positions of batch element 1.
        mask = jnp.stack([jnp.zeros((S,), bool), jnp.arange(S) >= S - 2])

        out = transformer_forward(params, src, mask, query_embed, pos_embed, NHEAD)
        out = jax.block_until_ready(out)
        assert out.shape == (B, D, S)

        ref = jax.block_until_ready(
            reference_forward(params, src, mask, pos_embed, NHEAD))
        # bf16 matmuls + approx reciprocal -> tolerance 5e-2.
        np.testing.assert_allclose(np.asarray(out), np.asarray(ref),
                                   atol=5e-2, rtol=5e-2)

    # TODO(synk): decoder / query_embed path is not part of the reference
    # module's forward (encoder only), so it is intentionally not implemented.
    print("KERNEL_OK")
</pallas_src>

<mosaic_0001>
module attributes {stable_mosaic.version = 11 : i64} {
  func.func @fused_encoder_kernel(%arg0: i32, %arg1: i32, %arg2: memref<1x8x32xf32, #tpu.memory_space<vmem>>, %arg3: memref<1x8x32xf32, #tpu.memory_space<vmem>>, %arg4: memref<1x1x8xf32, #tpu.memory_space<vmem>>, %arg5: memref<1x32x64xbf16, #tpu.memory_space<vmem>>, %arg6: memref<1x32x32xbf16, #tpu.memory_space<vmem>>, %arg7: memref<1x4x8x32xbf16, #tpu.memory_space<vmem>>, %arg8: memref<1x32x64xbf16, #tpu.memory_space<vmem>>, %arg9: memref<1x64x32xbf16, #tpu.memory_space<vmem>>, %arg10: memref<1x9x32xf32, #tpu.memory_space<vmem>>, %arg11: memref<1x1x64xf32, #tpu.memory_space<vmem>>, %arg12: memref<1x8x32xf32, #tpu.memory_space<vmem>>, %arg13: memref<8x32xf32, #tpu.memory_space<vmem>>, %arg14: memref<4x8x8xbf16, #tpu.memory_space<vmem>>, %arg15: memref<4x8x8xbf16, #tpu.memory_space<vmem>>, %arg16: memref<4x8x32xbf16, #tpu.memory_space<vmem>>) attributes {dimension_semantics = [#tpu.dimension_semantics<parallel>, #tpu.dimension_semantics<arbitrary>], iteration_bounds = array<i64: 2, 2>, scalar_prefetch = 0 : i64, scratch_operands = 4 : i64, tpu.core_type = #tpu.core_type<tc>, window_params = [{transform_indices = @transform_0, window_bounds = array<i64: 1, 8, 32>}, {transform_indices = @transform_1, window_bounds = array<i64: 1, 8, 32>}, {transform_indices = @transform_2, window_bounds = array<i64: 1, 1, 8>}, {transform_indices = @transform_3, window_bounds = array<i64: 1, 32, 64>}, {transform_indices = @transform_4, window_bounds = array<i64: 1, 32, 32>}, {transform_indices = @transform_5, window_bounds = array<i64: 1, 4, 8, 32>}, {transform_indices = @transform_6, window_bounds = array<i64: 1, 32, 64>}, {transform_indices = @transform_7, window_bounds = array<i64: 1, 64, 32>}, {transform_indices = @transform_8, window_bounds = array<i64: 1, 9, 32>}, {transform_indices = @transform_9, window_bounds = array<i64: 1, 1, 64>}, {transform_indices = @transform_10, window_bounds = array<i64: 1, 8, 32>}]} {
    %c0_i32 = arith.constant 0 : i32
    %0 = arith.cmpi eq, %arg1, %c0_i32 : i32
    %1 = arith.extui %0 : i1 to i32
    %c0_i32_0 = arith.constant 0 : i32
    %2 = arith.cmpi ne, %1, %c0_i32_0 : i32
    scf.if %2 {
      %c0_110 = arith.constant 0 : index
      %c0_111 = arith.constant 0 : index
      %c0_112 = arith.constant 0 : index
      %228 = vector.load %arg2[%c0_110, %c0_111, %c0_112] : memref<1x8x32xf32, #tpu.memory_space<vmem>>, vector<1x8x32xf32>
      %229 = vector.shape_cast %228 : vector<1x8x32xf32> to vector<8x32xf32>
      %c0_113 = arith.constant 0 : index
      %c0_114 = arith.constant 0 : index
      %230 = vector.load %arg13[%c0_113, %c0_114] : memref<8x32xf32, #tpu.memory_space<vmem>>, vector<8x32xf32>
      tpu.vector_store %arg13[%c0_113, %c0_114], %229 {strides = array<i32>} : memref<8x32xf32, #tpu.memory_space<vmem>>, vector<8x32xf32>,
    } else {
    }
    %c0 = arith.constant 0 : index
    %c0_1 = arith.constant 0 : index
    %3 = vector.load %arg13[%c0, %c0_1] : memref<8x32xf32, #tpu.memory_space<vmem>>, vector<8x32xf32>
    %c0_2 = arith.constant 0 : index
    %c0_3 = arith.constant 0 : index
    %c0_4 = arith.constant 0 : index
    %4 = vector.load %arg3[%c0_2, %c0_3, %c0_4] : memref<1x8x32xf32, #tpu.memory_space<vmem>>, vector<1x8x32xf32>
    %5 = vector.shape_cast %4 : vector<1x8x32xf32> to vector<8x32xf32>
    %c0_5 = arith.constant 0 : index
    %c0_6 = arith.constant 0 : index
    %c0_7 = arith.constant 0 : index
    %6 = vector.load %arg4[%c0_5, %c0_6, %c0_7] : memref<1x1x8xf32, #tpu.memory_space<vmem>>, vector<1x1x8xf32>
    %7 = vector.shape_cast %6 : vector<1x1x8xf32> to vector<1x8xf32>
    %c0_8 = arith.constant 0 : index
    %c0_9 = arith.constant 0 : index
    %c0_10 = arith.constant 0 : index
    %8 = vector.load %arg10[%c0_8, %c0_9, %c0_10] : memref<1x9x32xf32, #tpu.memory_space<vmem>>, vector<1x9x32xf32>
    %9 = vector.shape_cast %8 : vector<1x9x32xf32> to vector<9x32xf32>
    %10 = vector.extract_strided_slice %9 {offsets = [0, 0], sizes = [1, 32], strides = [1, 1]} : vector<9x32xf32> to vector<1x32xf32>
    %11 = vector.extract_strided_slice %9 {offsets = [1, 0], sizes = [1, 32], strides = [1, 1]} : vector<9x32xf32> to vector<1x32xf32>
    %12 = vector.extract_strided_slice %9 {offsets = [2, 0], sizes = [1, 32], strides = [1, 1]} : vector<9x32xf32> to vector<1x32xf32>
    %13 = vector.extract_strided_slice %9 {offsets = [3, 0], sizes = [1, 32], strides = [1, 1]} : vector<9x32xf32> to vector<1x32xf32>
    %14 = vector.extract_strided_slice %9 {offsets = [4, 0], sizes = [1, 32], strides = [1, 1]} : vector<9x32xf32> to vector<1x32xf32>
    %15 = vector.extract_strided_slice %9 {offsets = [5, 0], sizes = [1, 32], strides = [1, 1]} : vector<9x32xf32> to vector<1x32xf32>
    %16 = vector.extract_strided_slice %9 {offsets = [6, 0], sizes = [1, 32], strides = [1, 1]} : vector<9x32xf32> to vector<1x32xf32>
    %17 = vector.extract_strided_slice %9 {offsets = [7, 0], sizes = [1, 32], strides = [1, 1]} : vector<9x32xf32> to vector<1x32xf32>
    %18 = vector.extract_strided_slice %9 {offsets = [8, 0], sizes = [1, 32], strides = [1, 1]} : vector<9x32xf32> to vector<1x32xf32>
    %c0_11 = arith.constant 0 : index
    %c0_12 = arith.constant 0 : index
    %c0_13 = arith.constant 0 : index
    %19 = vector.load %arg11[%c0_11, %c0_12, %c0_13] : memref<1x1x64xf32, #tpu.memory_space<vmem>>, vector<1x1x64xf32>
    %20 = vector.shape_cast %19 : vector<1x1x64xf32> to vector<1x64xf32>
    %21 = arith.truncf %3 : vector<8x32xf32> to vector<8x32xbf16>
    %22 = arith.addf %3, %5 : vector<8x32xf32>
    %23 = arith.truncf %22 : vector<8x32xf32> to vector<8x32xbf16>
    %c0_14 = arith.constant 0 : index
    %c0_15 = arith.constant 0 : index
    %c0_16 = arith.constant 0 : index
    %24 = vector.load %arg5[%c0_14, %c0_15, %c0_16] : memref<1x32x64xbf16, #tpu.memory_space<vmem>>, vector<1x32x64xbf16>
    %25 = vector.shape_cast %24 : vector<1x32x64xbf16> to vector<32x64xbf16>
    %cst = arith.constant dense<0.000000e+00> : vector<8x64xf32>
    %26 = tpu.matmul %23, %25, %cst {dimension_numbers = #tpu.dot_dimension_numbers<[1], [0], [0], [1], [0, 0, 1, 1], [], []>} : vector<8x32xbf16>, vector<32x64xbf16>, vector<8x64xf32> -> vector<8x64xf32>
    %27 = vector.extract_strided_slice %26 {offsets = [0, 0], sizes = [8, 32], strides = [1, 1]} : vector<8x64xf32> to vector<8x32xf32>
    %28 = vector.broadcast %10 : vector<1x32xf32> to vector<8x32xf32>
    %29 = arith.addf %27, %28 : vector<8x32xf32>
    %30 = vector.extract_strided_slice %26 {offsets = [0, 32], sizes = [8, 32], strides = [1, 1]} : vector<8x64xf32> to vector<8x32xf32>
    %31 = vector.broadcast %11 : vector<1x32xf32> to vector<8x32xf32>
    %32 = arith.addf %30, %31 : vector<8x32xf32>
    %c0_17 = arith.constant 0 : index
    %c0_18 = arith.constant 0 : index
    %c0_19 = arith.constant 0 : index
    %33 = vector.load %arg6[%c0_17, %c0_18, %c0_19] : memref<1x32x32xbf16, #tpu.memory_space<vmem>>, vector<1x32x32xbf16>
    %34 = vector.shape_cast %33 : vector<1x32x32xbf16> to vector<32x32xbf16>
    %cst_20 = arith.constant dense<0.000000e+00> : vector<8x32xf32>
    %35 = tpu.matmul %21, %34, %cst_20 {dimension_numbers = #tpu.dot_dimension_numbers<[1], [0], [0], [1], [0, 0, 1, 1], [], []>} : vector<8x32xbf16>, vector<32x32xbf16>, vector<8x32xf32> -> vector<8x32xf32>
    %36 = vector.broadcast %12 : vector<1x32xf32> to vector<8x32xf32>
    %37 = arith.addf %35, %36 : vector<8x32xf32>
    %c0_21 = arith.constant 0 : index
    %c0_22 = arith.constant 0 : index
    %c0_23 = arith.constant 0 : index
    %c0_24 = arith.constant 0 : index
    %38 = vector.load %arg7[%c0_21, %c0_22, %c0_23, %c0_24] : memref<1x4x8x32xbf16, #tpu.memory_space<vmem>>, vector<1x4x8x32xbf16>
    %39 = vector.shape_cast %38 : vector<1x4x8x32xbf16> to vector<4x8x32xbf16>
    %40 = vector.extract_strided_slice %29 {offsets = [0, 0], sizes = [8, 8], strides = [1, 1]} : vector<8x32xf32> to vector<8x8xf32>
    %41 = arith.truncf %40 : vector<8x8xf32> to vector<8x8xbf16>
    %c0_25 = arith.constant 0 : index
    %c0_26 = arith.constant 0 : index
    %c0_27 = arith.constant 0 : index
    %42 = vector.load %arg14[%c0_25, %c0_26, %c0_27] : memref<4x8x8xbf16, #tpu.memory_space<vmem>>, vector<1x8x8xbf16>
    %43 = vector.shape_cast %42 : vector<1x8x8xbf16> to vector<8x8xbf16>
    %44 = vector.shape_cast %41 : vector<8x8xbf16> to vector<1x8x8xbf16>
    tpu.vector_store %arg14[%c0_25, %c0_26, %c0_27], %44 {strides = array<i32>} : memref<4x8x8xbf16, #tpu.memory_space<vmem>>, vector<1x8x8xbf16>,
    %45 = vector.extract_strided_slice %32 {offsets = [0, 0], sizes = [8, 8], strides = [1, 1]} : vector<8x32xf32> to vector<8x8xf32>
    %46 = arith.truncf %45 : vector<8x8xf32> to vector<8x8xbf16>
    %c0_28 = arith.constant 0 : index
    %c0_29 = arith.constant 0 : index
    %c0_30 = arith.constant 0 : index
    %47 = vector.load %arg15[%c0_28, %c0_29, %c0_30] : memref<4x8x8xbf16, #tpu.memory_space<vmem>>, vector<1x8x8xbf16>
    %48 = vector.shape_cast %47 : vector<1x8x8xbf16> to vector<8x8xbf16>
    %49 = vector.shape_cast %46 : vector<8x8xbf16> to vector<1x8x8xbf16>
    tpu.vector_store %arg15[%c0_28, %c0_29, %c0_30], %49 {strides = array<i32>} : memref<4x8x8xbf16, #tpu.memory_space<vmem>>, vector<1x8x8xbf16>,
    %50 = vector.extract_strided_slice %37 {offsets = [0, 0], sizes = [8, 8], strides = [1, 1]} : vector<8x32xf32> to vector<8x8xf32>
    %51 = arith.truncf %50 : vector<8x8xf32> to vector<8x8xbf16>
    %52 = vector.extract_strided_slice %39 {offsets = [0, 0, 0], sizes = [1, 8, 32], strides = [1, 1, 1]} : vector<4x8x32xbf16> to vector<1x8x32xbf16>
    %53 = vector.shape_cast %52 : vector<1x8x32xbf16> to vector<8x32xbf16>
    %cst_31 = arith.constant dense<0.000000e+00> : vector<8x32xf32>
    %54 = tpu.matmul %51, %53, %cst_31 {dimension_numbers = #tpu.dot_dimension_numbers<[1], [0], [0], [1], [0, 0, 1, 1], [], []>} : vector<8x8xbf16>, vector<8x32xbf16>, vector<8x32xf32> -> vector<8x32xf32>
    %55 = arith.truncf %54 : vector<8x32xf32> to vector<8x32xbf16>
    %c0_32 = arith.constant 0 : index
    %c0_33 = arith.constant 0 : index
    %c0_34 = arith.constant 0 : index
    %56 = vector.load %arg16[%c0_32, %c0_33, %c0_34] : memref<4x8x32xbf16, #tpu.memory_space<vmem>>, vector<1x8x32xbf16>
    %57 = vector.shape_cast %56 : vector<1x8x32xbf16> to vector<8x32xbf16>
    %58 = vector.shape_cast %55 : vector<8x32xbf16> to vector<1x8x32xbf16>
    tpu.vector_store %arg16[%c0_32, %c0_33, %c0_34], %58 {strides = array<i32>} : memref<4x8x32xbf16, #tpu.memory_space<vmem>>, vector<1x8x32xbf16>,
    %59 = vector.extract_strided_slice %29 {offsets = [0, 8], sizes = [8, 8], strides = [1, 1]} : vector<8x32xf32> to vector<8x8xf32>
    %60 = arith.truncf %59 : vector<8x8xf32> to vector<8x8xbf16>
    %c1 = arith.constant 1 : index
    %c0_35 = arith.constant 0 : index
    %c0_36 = arith.constant 0 : index
    %61 = vector.load %arg14[%c1, %c0_35, %c0_36] : memref<4x8x8xbf16, #tpu.memory_space<vmem>>, vector<1x8x8xbf16>
    %62 = vector.shape_cast %61 : vector<1x8x8xbf16> to vector<8x8xbf16>
    %63 = vector.shape_cast %60 : vector<8x8xbf16> to vector<1x8x8xbf16>
    tpu.vector_store %arg14[%c1, %c0_35, %c0_36], %63 {strides = array<i32>} : memref<4x8x8xbf16, #tpu.memory_space<vmem>>, vector<1x8x8xbf16>,
    %64 = vector.extract_strided_slice %32 {offsets = [0, 8], sizes = [8, 8], strides = [1, 1]} : vector<8x32xf32> to vector<8x8xf32>
    %65 = arith.truncf %64 : vector<8x8xf32> to vector<8x8xbf16>
    %c1_37 = arith.constant 1 : index
    %c0_38 = arith.constant 0 : index
    %c0_39 = arith.constant 0 : index
    %66 = vector.load %arg15[%c1_37, %c0_38, %c0_39] : memref<4x8x8xbf16, #tpu.memory_space<vmem>>, vector<1x8x8xbf16>
    %67 = vector.shape_cast %66 : vector<1x8x8xbf16> to vector<8x8xbf16>
    %68 = vector.shape_cast %65 : vector<8x8xbf16> to vector<1x8x8xbf16>
    tpu.vector_store %arg15[%c1_37, %c0_38, %c0_39], %68 {strides = array<i32>} : memref<4x8x8xbf16, #tpu.memory_space<vmem>>, vector<1x8x8xbf16>,
    %69 = vector.extract_strided_slice %37 {offsets = [0, 8], sizes = [8, 8], strides = [1, 1]} : vector<8x32xf32> to vector<8x8xf32>
    %70 = arith.truncf %69 : vector<8x8xf32> to vector<8x8xbf16>
    %71 = vector.extract_strided_slice %39 {offsets = [1, 0, 0], sizes = [1, 8, 32], strides = [1, 1, 1]} : vector<4x8x32xbf16> to vector<1x8x32xbf16>
    %72 = vector.shape_cast %71 : vector<1x8x32xbf16> to vector<8x32xbf16>
    %cst_40 = arith.constant dense<0.000000e+00> : vector<8x32xf32>
    %73 = tpu.matmul %70, %72, %cst_40 {dimension_numbers = #tpu.dot_dimension_numbers<[1], [0], [0], [1], [0, 0, 1, 1], [], []>} : vector<8x8xbf16>, vector<8x32xbf16>, vector<8x32xf32> -> vector<8x32xf32>
    %74 = arith.truncf %73 : vector<8x32xf32> to vector<8x32xbf16>
    %c1_41 = arith.constant 1 : index
    %c0_42 = arith.constant 0 : index
    %c0_43 = arith.constant 0 : index
    %75 = vector.load %arg16[%c1_41, %c0_42, %c0_43] : memref<4x8x32xbf16, #tpu.memory_space<vmem>>, vector<1x8x32xbf16>
    %76 = vector.shape_cast %75 : vector<1x8x32xbf16> to vector<8x32xbf16>
    %77 = vector.shape_cast %74 : vector<8x32xbf16> to vector<1x8x32xbf16>
    tpu.vector_store %arg16[%c1_41, %c0_42, %c0_43], %77 {strides = array<i32>} : memref<4x8x32xbf16, #tpu.memory_space<vmem>>, vector<1x8x32xbf16>,
    %78 = vector.extract_strided_slice %29 {offsets = [0, 16], sizes = [8, 8], strides = [1, 1]} : vector<8x32xf32> to vector<8x8xf32>
    %79 = arith.truncf %78 : vector<8x8xf32> to vector<8x8xbf16>
    %c2 = arith.constant 2 : index
    %c0_44 = arith.constant 0 : index
    %c0_45 = arith.constant 0 : index
    %80 = vector.load %arg14[%c2, %c0_44, %c0_45] : memref<4x8x8xbf16, #tpu.memory_space<vmem>>, vector<1x8x8xbf16>
    %81 = vector.shape_cast %80 : vector<1x8x8xbf16> to vector<8x8xbf16>
    %82 = vector.shape_cast %79 : vector<8x8xbf16> to vector<1x8x8xbf16>
    tpu.vector_store %arg14[%c2, %c0_44, %c0_45], %82 {strides = array<i32>} : memref<4x8x8xbf16, #tpu.memory_space<vmem>>, vector<1x8x8xbf16>,
    %83 = vector.extract_strided_slice %32 {offsets = [0, 16], sizes = [8, 8], strides = [1, 1]} : vector<8x32xf32> to vector<8x8xf32>
    %84 = arith.truncf %83 : vector<8x8xf32> to vector<8x8xbf16>
    %c2_46 = arith.constant 2 : index
    %c0_47 = arith.constant 0 : index
    %c0_48 = arith.constant 0 : index
    %85 = vector.load %arg15[%c2_46, %c0_47, %c0_48] : memref<4x8x8xbf16, #tpu.memory_space<vmem>>, vector<1x8x8xbf16>
    %86 = vector.shape_cast %85 : vector<1x8x8xbf16> to vector<8x8xbf16>
    %87 = vector.shape_cast %84 : vector<8x8xbf16> to vector<1x8x8xbf16>
    tpu.vector_store %arg15[%c2_46, %c0_47, %c0_48], %87 {strides = array<i32>} : memref<4x8x8xbf16, #tpu.memory_space<vmem>>, vector<1x8x8xbf16>,
    %88 = vector.extract_strided_slice %37 {offsets = [0, 16], sizes = [8, 8], strides = [1, 1]} : vector<8x32xf32> to vector<8x8xf32>
    %89 = arith.truncf %88 : vector<8x8xf32> to vector<8x8xbf16>
    %90 = vector.extract_strided_slice %39 {offsets = [2, 0, 0], sizes = [1, 8, 32], strides = [1, 1, 1]} : vector<4x8x32xbf16> to vector<1x8x32xbf16>
    %91 = vector.shape_cast %90 : vector<1x8x32xbf16> to vector<8x32xbf16>
    %cst_49 = arith.constant dense<0.000000e+00> : vector<8x32xf32>
    %92 = tpu.matmul %89, %91, %cst_49 {dimension_numbers = #tpu.dot_dimension_numbers<[1], [0], [0], [1], [0, 0, 1, 1], [], []>} : vector<8x8xbf16>, vector<8x32xbf16>, vector<8x32xf32> -> vector<8x32xf32>
    %93 = arith.truncf %92 : vector<8x32xf32> to vector<8x32xbf16>
    %c2_50 = arith.constant 2 : index
    %c0_51 = arith.constant 0 : index
    %c0_52 = arith.constant 0 : index
    %94 = vector.load %arg16[%c2_50, %c0_51, %c0_52] : memref<4x8x32xbf16, #tpu.memory_space<vmem>>, vector<1x8x32xbf16>
    %95 = vector.shape_cast %94 : vector<1x8x32xbf16> to vector<8x32xbf16>
    %96 = vector.shape_cast %93 : vector<8x32xbf16> to vector<1x8x32xbf16>
    tpu.vector_store %arg16[%c2_50, %c0_51, %c0_52], %96 {strides = array<i32>} : memref<4x8x32xbf16, #tpu.memory_space<vmem>>, vector<1x8x32xbf16>,
    %97 = vector.extract_strided_slice %29 {offsets = [0, 24], sizes = [8, 8], strides = [1, 1]} : vector<8x32xf32> to vector<8x8xf32>
    %98 = arith.truncf %97 : vector<8x8xf32> to vector<8x8xbf16>
    %c3 = arith.constant 3 : index
    %c0_53 = arith.constant 0 : index
    %c0_54 = arith.constant 0 : index
    %99 = vector.load %arg14[%c3, %c0_53, %c0_54] : memref<4x8x8xbf16, #tpu.memory_space<vmem>>, vector<1x8x8xbf16>
    %100 = vector.shape_cast %99 : vector<1x8x8xbf16> to vector<8x8xbf16>
    %101 = vector.shape_cast %98 : vector<8x8xbf16> to vector<1x8x8xbf16>
    tpu.vector_store %arg14[%c3, %c0_53, %c0_54], %101 {strides = array<i32>} : memref<4x8x8xbf16, #tpu.memory_space<vmem>>, vector<1x8x8xbf16>,
    %102 = vector.extract_strided_slice %32 {offsets = [0, 24], sizes = [8, 8], strides = [1, 1]} : vector<8x32xf32> to vector<8x8xf32>
    %103 = arith.truncf %102 : vector<8x8xf32> to vector<8x8xbf16>
    %c3_55 = arith.constant 3 : index
    %c0_56 = arith.constant 0 : index
    %c0_57 = arith.constant 0 : index
    %104 = vector.load %arg15[%c3_55, %c0_56, %c0_57] : memref<4x8x8xbf16, #tpu.memory_space<vmem>>, vector<1x8x8xbf16>
    %105 = vector.shape_cast %104 : vector<1x8x8xbf16> to vector<8x8xbf16>
    %106 = vector.shape_cast %103 : vector<8x8xbf16> to vector<1x8x8xbf16>
    tpu.vector_store %arg15[%c3_55, %c0_56, %c0_57], %106 {strides = array<i32>} : memref<4x8x8xbf16, #tpu.memory_space<vmem>>, vector<1x8x8xbf16>,
    %107 = vector.extract_strided_slice %37 {offsets = [0, 24], sizes = [8, 8], strides = [1, 1]} : vector<8x32xf32> to vector<8x8xf32>
    %108 = arith.truncf %107 : vector<8x8xf32> to vector<8x8xbf16>
    %109 = vector.extract_strided_slice %39 {offsets = [3, 0, 0], sizes = [1, 8, 32], strides = [1, 1, 1]} : vector<4x8x32xbf16> to vector<1x8x32xbf16>
    %110 = vector.shape_cast %109 : vector<1x8x32xbf16> to vector<8x32xbf16>
    %cst_58 = arith.constant dense<0.000000e+00> : vector<8x32xf32>
    %111 = tpu.matmul %108, %110, %cst_58 {dimension_numbers = #tpu.dot_dimension_numbers<[1], [0], [0], [1], [0, 0, 1, 1], [], []>} : vector<8x8xbf16>, vector<8x32xbf16>, vector<8x32xf32> -> vector<8x32xf32>
    %112 = arith.truncf %111 : vector<8x32xf32> to vector<8x32xbf16>
    %c3_59 = arith.constant 3 : index
    %c0_60 = arith.constant 0 : index
    %c0_61 = arith.constant 0 : index
    %113 = vector.load %arg16[%c3_59, %c0_60, %c0_61] : memref<4x8x32xbf16, #tpu.memory_space<vmem>>, vector<1x8x32xbf16>
    %114 = vector.shape_cast %113 : vector<1x8x32xbf16> to vector<8x32xbf16>
    %115 = vector.shape_cast %112 : vector<8x32xbf16> to vector<1x8x32xbf16>
    tpu.vector_store %arg16[%c3_59, %c0_60, %c0_61], %115 {strides = array<i32>} : memref<4x8x32xbf16, #tpu.memory_space<vmem>>, vector<1x8x32xbf16>,
    %c0_i32_62 = arith.constant 0 : i32
    %c8_i32 = arith.constant 8 : i32
    %116 = arith.muli %c0_i32_62, %c8_i32 : i32
    %117 = tpu.assume_multiple %116, 8 : i32
    %c0_63 = arith.constant 0 : index
    %118 = arith.index_cast %117 : i32 to index
    %c0_64 = arith.constant 0 : index
    %119 = vector.load %arg14[%c0_63, %118, %c0_64] : memref<4x8x8xbf16, #tpu.memory_space<vmem>>, vector<4x8x8xbf16>
    %c0_65 = arith.constant 0 : index
    %c0_66 = arith.constant 0 : index
    %c0_67 = arith.constant 0 : index
    %120 = vector.load %arg15[%c0_65, %c0_66, %c0_67] : memref<4x8x8xbf16, #tpu.memory_space<vmem>>, vector<4x8x8xbf16>
    "tpu.trace_start"() <{level = 10 : i32, message = "hqd,hkd->hqk"}> : () -> ()
    %cst_68 = arith.constant dense<0.000000e+00> : vector<4x8x8xf32>
    %121 = tpu.matmul %119, %120, %cst_68 {dimension_numbers = #tpu.dot_dimension_numbers<[2], [2], [1], [1], [0, 0, 0, 1, 1, 1], [0], [0]>} : vector<4x8x8xbf16>, vector<4x8x8xbf16>, vector<4x8x8xf32> -> vector<4x8x8xf32>
    "tpu.trace_stop"() : () -> ()
    %122 = vector.shape_cast %7 : vector<1x8xf32> to vector<1x1x8xf32>
    %123 = vector.broadcast %122 : vector<1x1x8xf32> to vector<4x8x8xf32>
    %124 = arith.addf %121, %123 : vector<4x8x8xf32>
    %cst_69 = arith.constant dense<0xFF800000> : vector<4x8xf32>
    %125 = vector.multi_reduction <maximumf>, %124, %cst_69 [2] : vector<4x8x8xf32> to vector<4x8xf32>
    %126 = vector.shape_cast %125 : vector<4x8xf32> to vector<4x8x1xf32>
    %127 = vector.broadcast %126 : vector<4x8x1xf32> to vector<4x8x8xf32>
    %128 = arith.subf %124, %127 : vector<4x8x8xf32>
    %129 = math.exp %128 : vector<4x8x8xf32>
    %cst_70 = arith.constant dense<0.000000e+00> : vector<4x8xf32>
    %130 = vector.multi_reduction <add>, %129, %cst_70 [2] : vector<4x8x8xf32> to vector<4x8xf32>
    %131 = vector.shape_cast %130 : vector<4x8xf32> to vector<4x8x1xf32>
    %132 = tpu.reciprocal %131 {approx = true} : vector<4x8x1xf32> -> vector<4x8x1xf32>
    %133 = vector.broadcast %132 : vector<4x8x1xf32> to vector<4x8x8xf32>
    %134 = arith.mulf %129, %133 : vector<4x8x8xf32>
    %135 = arith.truncf %134 : vector<4x8x8xf32> to vector<4x8x8xbf16>
    %136 = vector.extract_strided_slice %135 {offsets = [0, 0, 0], sizes = [1, 8, 8], strides = [1, 1, 1]} : vector<4x8x8xbf16> to vector<1x8x8xbf16>
    %137 = vector.shape_cast %136 : vector<1x8x8xbf16> to vector<8x8xbf16>
    %c0_71 = arith.constant 0 : index
    %c0_72 = arith.constant 0 : index
    %c0_73 = arith.constant 0 : index
    %138 = vector.load %arg16[%c0_71, %c0_72, %c0_73] : memref<4x8x32xbf16, #tpu.memory_space<vmem>>, vector<1x8x32xbf16>
    %139 = vector.shape_cast %138 : vector<1x8x32xbf16> to vector<8x32xbf16>
    %cst_74 = arith.constant dense<0.000000e+00> : vector<8x32xf32>
    %140 = tpu.matmul %137, %139, %cst_74 {dimension_numbers = #tpu.dot_dimension_numbers<[1], [0], [0], [1], [0, 0, 1, 1], [], []>} : vector<8x8xbf16>, vector<8x32xbf16>, vector<8x32xf32> -> vector<8x32xf32>
    %141 = vector.extract_strided_slice %135 {offsets = [1, 0, 0], sizes = [1, 8, 8], strides = [1, 1, 1]} : vector<4x8x8xbf16> to vector<1x8x8xbf16>
    %142 = vector.shape_cast %141 : vector<1x8x8xbf16> to vector<8x8xbf16>
    %c1_75 = arith.constant 1 : index
    %c0_76 = arith.constant 0 : index
    %c0_77 = arith.constant 0 : index
    %143 = vector.load %arg16[%c1_75, %c0_76, %c0_77] : memref<4x8x32xbf16, #tpu.memory_space<vmem>>, vector<1x8x32xbf16>
    %144 = vector.shape_cast %143 : vector<1x8x32xbf16> to vector<8x32xbf16>
    %cst_78 = arith.constant dense<0.000000e+00> : vector<8x32xf32>
    %145 = tpu.matmul %142, %144, %cst_78 {dimension_numbers = #tpu.dot_dimension_numbers<[1], [0], [0], [1], [0, 0, 1, 1], [], []>} : vector<8x8xbf16>, vector<8x32xbf16>, vector<8x32xf32> -> vector<8x32xf32>
    %146 = arith.addf %140, %145 : vector<8x32xf32>
    %147 = vector.extract_strided_slice %135 {offsets = [2, 0, 0], sizes = [1, 8, 8], strides = [1, 1, 1]} : vector<4x8x8xbf16> to vector<1x8x8xbf16>
    %148 = vector.shape_cast %147 : vector<1x8x8xbf16> to vector<8x8xbf16>
    %c2_79 = arith.constant 2 : index
    %c0_80 = arith.constant 0 : index
    %c0_81 = arith.constant 0 : index
    %149 = vector.load %arg16[%c2_79, %c0_80, %c0_81] : memref<4x8x32xbf16, #tpu.memory_space<vmem>>, vector<1x8x32xbf16>
    %150 = vector.shape_cast %149 : vector<1x8x32xbf16> to vector<8x32xbf16>
    %cst_82 = arith.constant dense<0.000000e+00> : vector<8x32xf32>
    %151 = tpu.matmul %148, %150, %cst_82 {dimension_numbers = #tpu.dot_dimension_numbers<[1], [0], [0], [1], [0, 0, 1, 1], [], []>} : vector<8x8xbf16>, vector<8x32xbf16>, vector<8x32xf32> -> vector<8x32xf32>
    %152 = arith.addf %146, %151 : vector<8x32xf32>
    %153 = vector.extract_strided_slice %135 {offsets = [3, 0, 0], sizes = [1, 8, 8], strides = [1, 1, 1]} : vector<4x8x8xbf16> to vector<1x8x8xbf16>
    %154 = vector.shape_cast %153 : vector<1x8x8xbf16> to vector<8x8xbf16>
    %c3_83 = arith.constant 3 : index
    %c0_84 = arith.constant 0 : index
    %c0_85 = arith.constant 0 : index
    %155 = vector.load %arg16[%c3_83, %c0_84, %c0_85] : memref<4x8x32xbf16, #tpu.memory_space<vmem>>, vector<1x8x32xbf16>
    %156 = vector.shape_cast %155 : vector<1x8x32xbf16> to vector<8x32xbf16>
    %cst_86 = arith.constant dense<0.000000e+00> : vector<8x32xf32>
    %157 = tpu.matmul %154, %156, %cst_86 {dimension_numbers = #tpu.dot_dimension_numbers<[1], [0], [0], [1], [0, 0, 1, 1], [], []>} : vector<8x8xbf16>, vector<8x32xbf16>, vector<8x32xf32> -> vector<8x32xf32>
    %158 = arith.addf %152, %157 : vector<8x32xf32>
    %159 = vector.broadcast %13 : vector<1x32xf32> to vector<8x32xf32>
    %160 = arith.addf %158, %159 : vector<8x32xf32>
    %161 = arith.index_cast %117 : i32 to index
    %c0_87 = arith.constant 0 : index
    %162 = vector.load %arg13[%161, %c0_87] : memref<8x32xf32, #tpu.memory_space<vmem>>, vector<8x32xf32>
    %163 = arith.addf %162, %160 : vector<8x32xf32>
    %cst_88 = arith.constant dense<0.000000e+00> : vector<8xf32>
    %164 = vector.multi_reduction <add>, %163, %cst_88 [1] : vector<8x32xf32> to vector<8xf32>
    %165 = vector.shape_cast %164 : vector<8xf32> to vector<8x1xf32>
    %cst_89 = arith.constant 3.200000e+01 : f32
    %166 = vector.broadcast %cst_89 : f32 to vector<8x1xf32>
    %167 = arith.divf %165, %166 : vector<8x1xf32>
    %168 = vector.broadcast %167 : vector<8x1xf32> to vector<8x32xf32>
    %169 = arith.subf %163, %168 : vector<8x32xf32>
    %170 = arith.mulf %169, %169 : vector<8x32xf32>
    %cst_90 = arith.constant dense<0.000000e+00> : vector<8xf32>
    %171 = vector.multi_reduction <add>, %170, %cst_90 [1] : vector<8x32xf32> to vector<8xf32>
    %172 = vector.shape_cast %171 : vector<8xf32> to vector<8x1xf32>
    %cst_91 = arith.constant 3.200000e+01 : f32
    %173 = vector.broadcast %cst_91 : f32 to vector<8x1xf32>
    %174 = arith.divf %172, %173 : vector<8x1xf32>
    %175 = vector.broadcast %167 : vector<8x1xf32> to vector<8x32xf32>
    %176 = arith.subf %163, %175 : vector<8x32xf32>
    %cst_92 = arith.constant 9.99999974E-6 : f32
    %177 = vector.broadcast %cst_92 : f32 to vector<8x1xf32>
    %178 = arith.addf %174, %177 : vector<8x1xf32>
    %179 = math.rsqrt %178 : vector<8x1xf32>
    %180 = vector.broadcast %179 : vector<8x1xf32> to vector<8x32xf32>
    %181 = arith.mulf %176, %180 : vector<8x32xf32>
    %182 = vector.broadcast %14 : vector<1x32xf32> to vector<8x32xf32>
    %183 = arith.mulf %181, %182 : vector<8x32xf32>
    %184 = vector.broadcast %15 : vector<1x32xf32> to vector<8x32xf32>
    %185 = arith.addf %183, %184 : vector<8x32xf32>
    %186 = arith.truncf %185 : vector<8x32xf32> to vector<8x32xbf16>
    %c0_93 = arith.constant 0 : index
    %c0_94 = arith.constant 0 : index
    %c0_95 = arith.constant 0 : index
    %187 = vector.load %arg8[%c0_93, %c0_94, %c0_95] : memref<1x32x64xbf16, #tpu.memory_space<vmem>>, vector<1x32x64xbf16>
    %188 = vector.shape_cast %187 : vector<1x32x64xbf16> to vector<32x64xbf16>
    %cst_96 = arith.constant dense<0.000000e+00> : vector<8x64xf32>
    %189 = tpu.matmul %186, %188, %cst_96 {dimension_numbers = #tpu.dot_dimension_numbers<[1], [0], [0], [1], [0, 0, 1, 1], [], []>} : vector<8x32xbf16>, vector<32x64xbf16>, vector<8x64xf32> -> vector<8x64xf32>
    %190 = vector.broadcast %20 : vector<1x64xf32> to vector<8x64xf32>
    %191 = arith.addf %189, %190 : vector<8x64xf32>
    %cst_97 = arith.constant 0.000000e+00 : f32
    %192 = vector.broadcast %cst_97 : f32 to vector<8x64xf32>
    %193 = arith.maximumf %191, %192 : vector<8x64xf32>
    %194 = arith.truncf %193 : vector<8x64xf32> to vector<8x64xbf16>
    %c0_98 = arith.constant 0 : index
    %c0_99 = arith.constant 0 : index
    %c0_100 = arith.constant 0 : index
    %195 = vector.load %arg9[%c0_98, %c0_99, %c0_100] : memref<1x64x32xbf16, #tpu.memory_space<vmem>>, vector<1x64x32xbf16>
    %196 = vector.shape_cast %195 : vector<1x64x32xbf16> to vector<64x32xbf16>
    %cst_101 = arith.constant dense<0.000000e+00> : vector<8x32xf32>
    %197 = tpu.matmul %194, %196, %cst_101 {dimension_numbers = #tpu.dot_dimension_numbers<[1], [0], [0], [1], [0, 0, 1, 1], [], []>} : vector<8x64xbf16>, vector<64x32xbf16>, vector<8x32xf32> -> vector<8x32xf32>
    %198 = vector.broadcast %16 : vector<1x32xf32> to vector<8x32xf32>
    %199 = arith.addf %197, %198 : vector<8x32xf32>
    %200 = arith.addf %185, %199 : vector<8x32xf32>
    %cst_102 = arith.constant dense<0.000000e+00> : vector<8xf32>
    %201 = vector.multi_reduction <add>, %200, %cst_102 [1] : vector<8x32xf32> to vector<8xf32>
    %202 = vector.shape_cast %201 : vector<8xf32> to vector<8x1xf32>
    %cst_103 = arith.constant 3.200000e+01 : f32
    %203 = vector.broadcast %cst_103 : f32 to vector<8x1xf32>
    %204 = arith.divf %202, %203 : vector<8x1xf32>
    %205 = vector.broadcast %204 : vector<8x1xf32> to vector<8x32xf32>
    %206 = arith.subf %200, %205 : vector<8x32xf32>
    %207 = arith.mulf %206, %206 : vector<8x32xf32>
    %cst_104 = arith.constant dense<0.000000e+00> : vector<8xf32>
    %208 = vector.multi_reduction <add>, %207, %cst_104 [1] : vector<8x32xf32> to vector<8xf32>
    %209 = vector.shape_cast %208 : vector<8xf32> to vector<8x1xf32>
    %cst_105 = arith.constant 3.200000e+01 : f32
    %210 = vector.broadcast %cst_105 : f32 to vector<8x1xf32>
    %211 = arith.divf %209, %210 : vector<8x1xf32>
    %212 = vector.broadcast %204 : vector<8x1xf32> to vector<8x32xf32>
    %213 = arith.subf %200, %212 : vector<8x32xf32>
    %cst_106 = arith.constant 9.99999974E-6 : f32
    %214 = vector.broadcast %cst_106 : f32 to vector<8x1xf32>
    %215 = arith.addf %211, %214 : vector<8x1xf32>
    %216 = math.rsqrt %215 : vector<8x1xf32>
    %217 = vector.broadcast %216 : vector<8x1xf32> to vector<8x32xf32>
    %218 = arith.mulf %213, %217 : vector<8x32xf32>
    %219 = vector.broadcast %17 : vector<1x32xf32> to vector<8x32xf32>
    %220 = arith.mulf %218, %219 : vector<8x32xf32>
    %221 = vector.broadcast %18 : vector<1x32xf32> to vector<8x32xf32>
    %222 = arith.addf %220, %221 : vector<8x32xf32>
    %223 = arith.index_cast %117 : i32 to index
    %c0_107 = arith.constant 0 : index
    %224 = vector.load %arg13[%223, %c0_107] : memref<8x32xf32, #tpu.memory_space<vmem>>, vector<8x32xf32>
    tpu.vector_store %arg13[%223, %c0_107], %222 {strides = array<i32>} : memref<8x32xf32, #tpu.memory_space<vmem>>, vector<8x32xf32>,
    %c1_i32 = arith.constant 1 : i32
    %c1_i32_108 = arith.constant 1 : i32
    %225 = arith.cmpi eq, %arg1, %c1_i32_108 : i32
    %226 = arith.extui %225 : i1 to i32
    %c0_i32_109 = arith.constant 0 : i32
    %227 = arith.cmpi ne, %226, %c0_i32_109 : i32
    scf.if %227 {
      %c0_110 = arith.constant 0 : index
      %c0_111 = arith.constant 0 : index
      %228 = vector.load %arg13[%c0_110, %c0_111] : memref<8x32xf32, #tpu.memory_space<vmem>>, vector<8x32xf32>
      %c0_112 = arith.constant 0 : index
      %c0_113 = arith.constant 0 : index
      %c0_114 = arith.constant 0 : index
      %229 = vector.load %arg12[%c0_112, %c0_113, %c0_114] : memref<1x8x32xf32, #tpu.memory_space<vmem>>, vector<1x8x32xf32>
      %230 = vector.shape_cast %229 : vector<1x8x32xf32> to vector<8x32xf32>
      %231 = vector.shape_cast %228 : vector<8x32xf32> to vector<1x8x32xf32>
      tpu.vector_store %arg12[%c0_112, %c0_113, %c0_114], %231 {strides = array<i32>} : memref<1x8x32xf32, #tpu.memory_space<vmem>>, vector<1x8x32xf32>,
    } else {
    }
    return
  }
  func.func @transform_0(%arg0: i32, %arg1: i32) -> (i32, i32, i32) {
    %c0_i32 = arith.constant 0 : i32
    %c0_i32_0 = arith.constant 0 : i32
    %c0_i32_1 = arith.constant 0 : i32
    return %arg0, %c0_i32, %c0_i32_0 : i32, i32, i32
  }
  func.func @transform_1(%arg0: i32, %arg1: i32) -> (i32, i32, i32) {
    %c0_i32 = arith.constant 0 : i32
    %c0_i32_0 = arith.constant 0 : i32
    %c0_i32_1 = arith.constant 0 : i32
    return %arg0, %c0_i32, %c0_i32_0 : i32, i32, i32
  }
  func.func @transform_2(%arg0: i32, %arg1: i32) -> (i32, i32, i32) {
    %c0_i32 = arith.constant 0 : i32
    %c0_i32_0 = arith.constant 0 : i32
    %c0_i32_1 = arith.constant 0 : i32
    return %arg0, %c0_i32, %c0_i32_0 : i32, i32, i32
  }
  func.func @transform_3(%arg0: i32, %arg1: i32) -> (i32, i32, i32) {
    %c0_i32 = arith.constant 0 : i32
    %c0_i32_0 = arith.constant 0 : i32
    %c0_i32_1 = arith.constant 0 : i32
    return %arg1, %c0_i32, %c0_i32_0 : i32, i32, i32
  }
  func.func @transform_4(%arg0: i32, %arg1: i32) -> (i32, i32, i32) {
    %c0_i32 = arith.constant 0 : i32
    %c0_i32_0 = arith.constant 0 : i32
    %c0_i32_1 = arith.constant 0 : i32
    return %arg1, %c0_i32, %c0_i32_0 : i32, i32, i32
  }
  func.func @transform_5(%arg0: i32, %arg1: i32) -> (i32, i32, i32, i32) {
    %c0_i32 = arith.constant 0 : i32
    %c0_i32_0 = arith.constant 0 : i32
    %c0_i32_1 = arith.constant 0 : i32
    %c0_i32_2 = arith.constant 0 : i32
    return %arg1, %c0_i32, %c0_i32_0, %c0_i32_1 : i32, i32, i32, i32
  }
  func.func @transform_6(%arg0: i32, %arg1: i32) -> (i32, i32, i32) {
    %c0_i32 = arith.constant 0 : i32
    %c0_i32_0 = arith.constant 0 : i32
    %c0_i32_1 = arith.constant 0 : i32
    return %arg1, %c0_i32, %c0_i32_0 : i32, i32, i32
  }
  func.func @transform_7(%arg0: i32, %arg1: i32) -> (i32, i32, i32) {
    %c0_i32 = arith.constant 0 : i32
    %c0_i32_0 = arith.constant 0 : i32
    %c0_i32_1 = arith.constant 0 : i32
    return %arg1, %c0_i32, %c0_i32_0 : i32, i32, i32
  }
  func.func @transform_8(%arg0: i32, %arg1: i32) -> (i32, i32, i32) {
    %c0_i32 = arith.constant 0 : i32
    %c0_i32_0 = arith.constant 0 : i32
    %c0_i32_1 = arith.constant 0 : i32
    return %arg1, %c0_i32, %c0_i32_0 : i32, i32, i32
  }
  func.func @transform_9(%arg0: i32, %arg1: i32) -> (i32, i32, i32) {
    %c0_i32 = arith.constant 0 : i32
    %c0_i32_0 = arith.constant 0 : i32
    %c0_i32_1 = arith.constant 0 : i32
    return %arg1, %c0_i32, %c0_i32_0 : i32, i32, i32
  }
  func.func @transform_10(%arg0: i32, %arg1: i32) -> (i32, i32, i32) {
    %c0_i32 = arith.constant 0 : i32
    %c0_i32_0 = arith.constant 0 : i32
    %c0_i32_1 = arith.constant 0 : i32
    return %arg0, %c0_i32, %c0_i32_0 : i32, i32, i32
  }
}

</mosaic_0001>

<llo_original>
// kernel: tpu_custom_call.1
$region0: #{tpu_custom_call.1}
  #allocation0 [shape = 'u32[]', space=smem, size = 0x4, offset = 0x4, fixed_abs, tag = 'smem constant byte address 0x4 - core index']
  #allocation1 [shape = 'u32[144,128]{1,0:T(1,128)}', space=vmem, size = 0x12000, scoped, tag = 'internal scratch']
  #allocation2 [shape = 'f32[8,32]{1,0:T(8,128)}', space=vmem, size = 0x1000, scoped, tag = 'scratch operand']
  #allocation3 [shape = 'bf16[4,8,8]{2,1,0:T(8,128)(2,1)}', space=vmem, size = 0x2000, scoped, tag = 'scratch operand']
  #allocation4 [shape = 'bf16[4,8,8]{2,1,0:T(8,128)(2,1)}', space=vmem, size = 0x2000, scoped, tag = 'scratch operand']
  #allocation5 [shape = 'bf16[4,8,32]{2,1,0:T(8,128)(2,1)}', space=vmem, size = 0x2000, scoped, tag = 'scratch operand']
  %s0 = inlined_call_operand.vmem [shape: f32[2,8,32], index: 0, kind: input, shape index: {}]
  %s1 = inlined_call_operand.hbm [shape: f32[2,8,32], index: 1, kind: input, shape index: {}]
  %s2 = inlined_call_operand.vmem [shape: f32[2,1,8], index: 2, kind: input, shape index: {}]
  %s3 = inlined_call_operand.vmem [shape: bf16[2,32,64], index: 3, kind: input, shape index: {}]
  %s4 = inlined_call_operand.vmem [shape: bf16[2,32,32], index: 4, kind: input, shape index: {}]
  %s5 = inlined_call_operand.vmem [shape: bf16[2,4,8,32], index: 5, kind: input, shape index: {}]
  %s6 = inlined_call_operand.vmem [shape: bf16[2,32,64], index: 6, kind: input, shape index: {}]
  %s7 = inlined_call_operand.vmem [shape: bf16[2,64,32], index: 7, kind: input, shape index: {}]
  %s8 = inlined_call_operand.vmem [shape: f32[2,9,32], index: 8, kind: input, shape index: {}]
  %s9 = inlined_call_operand.vmem [shape: f32[2,1,64], index: 9, kind: input, shape index: {}]
  %s10 = inlined_call_operand.hbm [shape: f32[2,8,32], index: 10, kind: output, shape index: {}]
  %s11 = sld [smem:[#allocation0]]
  $region85: #{tpu_custom_call.1} parent=0
    _
  %s13 = ssub.s32 1, %s11
  %s14 = scalar_select 0, %s13, %s11
  $region1: #{tpu_custom_call.1} parent=0
    #allocation6 [shape = 'u8[8192]{0}', space=vmem, size = 0x2000, scoped, tag = 'input window, operand 1']
    #allocation7 [shape = 's32[2]{0}', space=sflag, size = 0x8, scoped, tag = 'scoped memory for tpu_custom_call.1']
    #allocation8 [shape = 's32[2]{0}', space=sflag, size = 0x8, scoped, tag = 'scoped memory for tpu_custom_call.1']
    #allocation9 [shape = 'u8[8192]{0}', space=vmem, size = 0x2000, scoped, tag = 'output window, operand 0']
    %15 = vsyncpa [#allocation7], 0
    %s16 = scalar_lea.sflag [#allocation7], 1
    %17 = vsyncpa %s16, 0
    %18 = vsyncpa [#allocation8], 0
    %s19 = scalar_lea.sflag [#allocation8], 1
    %20 = vsyncpa %s19, 0
    loop: start=0, step=1, limit=6
    $region2: #{tpu_custom_call.1} parent=1 // loop_pre_header
      _
    $region3: #{tpu_custom_call.1} parent=1 // loop_header
      %s22 = sphi 0, %s26
      %p23 = scmp.ge.s32.totalorder %s22, 6
      %s29 = sphi 0, %s41
      %s30 = sphi 0, %s37
      %s31 = sphi 0, %s29
      %s32 = sphi 0, %s30
      %s33 = sphi 0, %s31
      %s34 = sphi 0, %s32
      %s44 = sphi 0, %s46
      %s47 = sphi 0, %s44
      %s48 = sphi 0, %s47
      %s64 = sphi 0, %s48
      %s70 = sphi 0, %s72
      %s73 = sphi 0, %s70
      %s74 = sphi 0, %s73
      %s90 = sphi 0, %s74
      %s96 = sphi 0, %s98
      %s99 = sphi 0, %s96
      %s100 = sphi 0, %s99
      %s116 = sphi 0, %s100
      %s122 = sphi 0, %s124
      %s125 = sphi 0, %s122
      %s126 = sphi 0, %s125
      %s142 = sphi 0, %s126
      %s148 = sphi 0, %s150
      %s151 = sphi 0, %s148
      %s152 = sphi 0, %s151
      %s168 = sphi 0, %s152
      %s174 = sphi 0, %s176
      %s177 = sphi 0, %s174
      %s178 = sphi 0, %s177
      %s194 = sphi 0, %s178
      %s200 = sphi 0, %s202
      %s203 = sphi 0, %s200
      %s204 = sphi 0, %s203
      %s220 = sphi 0, %s204
      %s226 = sphi 0, %s228
      %s229 = sphi 0, %s226
      %s230 = sphi 0, %s229
      %s246 = sphi 0, %s230
      %s252 = sphi 0, %s254
      %s255 = sphi 0, %s252
      %s256 = sphi 0, %s255
      %s272 = sphi 0, %s256
      %s278 = sphi 0, %s280
      %s281 = sphi 0, %s278
      %s282 = sphi 0, %s281
      %s298 = sphi 0, %s282
      %s304 = sphi 0, %s306
      %s307 = sphi 0, %s304
      %s308 = sphi 0, %s307
      %s324 = sphi 0, %s308
    $region4: #{tpu_custom_call.1} parent=1 // loop_header_branch
      %25 = sbr.rel (%p23) target = $region8
    $region5: #{tpu_custom_call.1} parent=1 // loop_body
      %s27 = ssub.s32 %s22, 1
      %s28 = ssub.s32 %s22, 2
      %s35 = sadd.s32 1, %s30
      %p36 = scmp.ge.s32.totalorder %s35, 2
      %s37 = scalar_select %p36, 0, %s35
      %s38 = sadd.s32 1, %s29
      %s39 = scalar_select %p36, %s38, %s29
      %p40 = scmp.ge.s32.totalorder %s39, 2
      %s41 = scalar_select %p40, 0, %s39
      %s42 = ssub.s32 %s29, %s41
      %p43 = scmp.eq.s32.totalorder %s42, 0
      %s45 = sadd.s32 %s44, 1
      %s46 = scalar_select %p43, %s44, %s45
      %p49 = pneg %p43
      %p50 = scmp.eq.s32.totalorder %s22, 3
      %p51 = por %p49, %p50
      %p52 = scmp.ne.s32.totalorder %s44, %s47
      %p53 = scmp.eq.s32.totalorder %s22, 0
      %p54 = por %p52, %p53
      %p55 = scmp.ne.s32.totalorder %s44, %s47
      %p56 = scmp.eq.s32.totalorder %s27, 3
      %p57 = por %p55, %p56
      %p58 = scmp.ne.s32.totalorder %s47, %s48
      %p59 = scmp.eq.s32.totalorder %s27, 0
      %p60 = por %p58, %p59
      %p61 = scmp.ne.s32.totalorder %s47, %s48
      %p62 = scmp.eq.s32.totalorder %s28, 3
      %p63 = por %p61, %p62
      %p65 = scmp.ne.s32.totalorder %s48, %s64
      %p66 = scmp.eq.s32.totalorder %s28, 0
      %p67 = por %p65, %p66
      %s68 = ssub.s32 %s29, %s41
      %p69 = scmp.eq.s32.totalorder %s68, 0
      %s71 = sadd.s32 %s70, 1
      %s72 = scalar_select %p69, %s70, %s71
      %p75 = pneg %p69
      %p76 = scmp.eq.s32.totalorder %s22, 3
      %p77 = por %p75, %p76
      %p78 = scmp.ne.s32.totalorder %s70, %s73
      %p79 = scmp.eq.s32.totalorder %s22, 0
      %p80 = por %p78, %p79
      %p81 = scmp.ne.s32.totalorder %s70, %s73
      %p82 = scmp.eq.s32.totalorder %s27, 3
      %p83 = por %p81, %p82
      %p84 = scmp.ne.s32.totalorder %s73, %s74
      %p85 = scmp.eq.s32.totalorder %s27, 0
      %p86 = por %p84, %p85
      %p87 = scmp.ne.s32.totalorder %s73, %s74
      %p88 = scmp.eq.s32.totalorder %s28, 3
      %p89 = por %p87, %p88
      %p91 = scmp.ne.s32.totalorder %s74, %s90
      %p92 = scmp.eq.s32.totalorder %s28, 0
      %p93 = por %p91, %p92
      %s94 = ssub.s32 %s29, %s41
      %p95 = scmp.eq.s32.totalorder %s94, 0
      %s97 = sadd.s32 %s96, 1
      %s98 = scalar_select %p95, %s96, %s97
      %p101 = pneg %p95
      %p102 = scmp.eq.s32.totalorder %s22, 3
      %p103 = por %p101, %p102
      %p104 = scmp.ne.s32.totalorder %s96, %s99
      %p105 = scmp.eq.s32.totalorder %s22, 0
      %p106 = por %p104, %p105
      %p107 = scmp.ne.s32.totalorder %s96, %s99
      %p108 = scmp.eq.s32.totalorder %s27, 3
      %p109 = por %p107, %p108
      %p110 = scmp.ne.s32.totalorder %s99, %s100
      %p111 = scmp.eq.s32.totalorder %s27, 0
      %p112 = por %p110, %p111
      %p113 = scmp.ne.s32.totalorder %s99, %s100
      %p114 = scmp.eq.s32.totalorder %s28, 3
      %p115 = por %p113, %p114
      %p117 = scmp.ne.s32.totalorder %s100, %s116
      %p118 = scmp.eq.s32.totalorder %s28, 0
      %p119 = por %p117, %p118
      %s120 = ssub.s32 %s30, %s37
      %p121 = scmp.eq.s32.totalorder %s120, 0
      %s123 = sadd.s32 %s122, 1
      %s124 = scalar_select %p121, %s122, %s123
      %p127 = pneg %p121
      %p128 = scmp.eq.s32.totalorder %s22, 3
      %p129 = por %p127, %p128
      %p130 = scmp.ne.s32.totalorder %s122, %s125
      %p131 = scmp.eq.s32.totalorder %s22, 0
      %p132 = por %p130, %p131
      %p133 = scmp.ne.s32.totalorder %s122, %s125
      %p134 = scmp.eq.s32.totalorder %s27, 3
      %p135 = por %p133, %p134
      %p136 = scmp.ne.s32.totalorder %s125, %s126
      %p137 = scmp.eq.s32.totalorder %s27, 0
      %p138 = por %p136, %p137
      %p139 = scmp.ne.s32.totalorder %s125, %s126
      %p140 = scmp.eq.s32.totalorder %s28, 3
      %p141 = por %p139, %p140
      %p143 = scmp.ne.s32.totalorder %s126, %s142
      %p144 = scmp.eq.s32.totalorder %s28, 0
      %p145 = por %p143, %p144
      %s146 = ssub.s32 %s30, %s37
      %p147 = scmp.eq.s32.totalorder %s146, 0
      %s149 = sadd.s32 %s148, 1
      %s150 = scalar_select %p147, %s148, %s149
      %p153 = pneg %p147
      %p154 = scmp.eq.s32.totalorder %s22, 3
      %p155 = por %p153, %p154
      %p156 = scmp.ne.s32.totalorder %s148, %s151
      %p157 = scmp.eq.s32.totalorder %s22, 0
      %p158 = por %p156, %p157
      %p159 = scmp.ne.s32.totalorder %s148, %s151
      %p160 = scmp.eq.s32.totalorder %s27, 3
      %p161 = por %p159, %p160
      %p162 = scmp.ne.s32.totalorder %s151, %s152
      %p163 = scmp.eq.s32.totalorder %s27, 0
      %p164 = por %p162, %p163
      %p165 = scmp.ne.s32.totalorder %s151, %s152
      %p166 = scmp.eq.s32.totalorder %s28, 3
      %p167 = por %p165, %p166
      %p169 = scmp.ne.s32.totalorder %s152, %s168
      %p170 = scmp.eq.s32.totalorder %s28, 0
      %p171 = por %p169, %p170
      %s172 = ssub.s32 %s30, %s37
      %p173 = scmp.eq.s32.totalorder %s172, 0
      %s175 = sadd.s32 %s174, 1
      %s176 = scalar_select %p173, %s174, %s175
      %p179 = pneg %p173
      %p180 = scmp.eq.s32.totalorder %s22, 3
      %p181 = por %p179, %p180
      %p182 = scmp.ne.s32.totalorder %s174, %s177
      %p183 = scmp.eq.s32.totalorder %s22, 0
      %p184 = por %p182, %p183
      %p185 = scmp.ne.s32.totalorder %s174, %s177
      %p186 = scmp.eq.s32.totalorder %s27, 3
      %p187 = por %p185, %p186
      %p188 = scmp.ne.s32.totalorder %s177, %s178
      %p189 = scmp.eq.s32.totalorder %s27, 0
      %p190 = por %p188, %p189
      %p191 = scmp.ne.s32.totalorder %s177, %s178
      %p192 = scmp.eq.s32.totalorder %s28, 3
      %p193 = por %p191, %p192
      %p195 = scmp.ne.s32.totalorder %s178, %s194
      %p196 = scmp.eq.s32.totalorder %s28, 0
      %p197 = por %p195, %p196
      %s198 = ssub.s32 %s30, %s37
      %p199 = scmp.eq.s32.totalorder %s198, 0
      %s201 = sadd.s32 %s200, 1
      %s202 = scalar_select %p199, %s200, %s201
      %p205 = pneg %p199
      %p206 = scmp.eq.s32.totalorder %s22, 3
      %p207 = por %p205, %p206
      %p208 = scmp.ne.s32.totalorder %s200, %s203
      %p209 = scmp.eq.s32.totalorder %s22, 0
      %p210 = por %p208, %p209
      %p211 = scmp.ne.s32.totalorder %s200, %s203
      %p212 = scmp.eq.s32.totalorder %s27, 3
      %p213 = por %p211, %p212
      %p214 = scmp.ne.s32.totalorder %s203, %s204
      %p215 = scmp.eq.s32.totalorder %s27, 0
      %p216 = por %p214, %p215
      %p217 = scmp.ne.s32.totalorder %s203, %s204
      %p218 = scmp.eq.s32.totalorder %s28, 3
      %p219 = por %p217, %p218
      %p221 = scmp.ne.s32.totalorder %s204, %s220
      %p222 = scmp.eq.s32.totalorder %s28, 0
      %p223 = por %p221, %p222
      %s224 = ssub.s32 %s30, %s37
      %p225 = scmp.eq.s32.totalorder %s224, 0
      %s227 = sadd.s32 %s226, 1
      %s228 = scalar_select %p225, %s226, %s227
      %p231 = pneg %p225
      %p232 = scmp.eq.s32.totalorder %s22, 3
      %p233 = por %p231, %p232
      %p234 = scmp.ne.s32.totalorder %s226, %s229
      %p235 = scmp.eq.s32.totalorder %s22, 0
      %p236 = por %p234, %p235
      %p237 = scmp.ne.s32.totalorder %s226, %s229
      %p238 = scmp.eq.s32.totalorder %s27, 3
      %p239 = por %p237, %p238
      %p240 = scmp.ne.s32.totalorder %s229, %s230
      %p241 = scmp.eq.s32.totalorder %s27, 0
      %p242 = por %p240, %p241
      %p243 = scmp.ne.s32.totalorder %s229, %s230
      %p244 = scmp.eq.s32.totalorder %s28, 3
      %p245 = por %p243, %p244
      %p247 = scmp.ne.s32.totalorder %s230, %s246
      %p248 = scmp.eq.s32.totalorder %s28, 0
      %p249 = por %p247, %p248
      %s250 = ssub.s32 %s30, %s37
      %p251 = scmp.eq.s32.totalorder %s250, 0
      %s253 = sadd.s32 %s252, 1
      %s254 = scalar_select %p251, %s252, %s253
      %p257 = pneg %p251
      %p258 = scmp.eq.s32.totalorder %s22, 3
      %p259 = por %p257, %p258
      %p260 = scmp.ne.s32.totalorder %s252, %s255
      %p261 = scmp.eq.s32.totalorder %s22, 0
      %p262 = por %p260, %p261
      %p263 = scmp.ne.s32.totalorder %s252, %s255
      %p264 = scmp.eq.s32.totalorder %s27, 3
      %p265 = por %p263, %p264
      %p266 = scmp.ne.s32.totalorder %s255, %s256
      %p267 = scmp.eq.s32.totalorder %s27, 0
      %p268 = por %p266, %p267
      %p269 = scmp.ne.s32.totalorder %s255, %s256
      %p270 = scmp.eq.s32.totalorder %s28, 3
      %p271 = por %p269, %p270
      %p273 = scmp.ne.s32.totalorder %s256, %s272
      %p274 = scmp.eq.s32.totalorder %s28, 0
      %p275 = por %p273, %p274
      %s276 = ssub.s32 %s30, %s37
      %p277 = scmp.eq.s32.totalorder %s276, 0
      %s279 = sadd.s32 %s278, 1
      %s280 = scalar_select %p277, %s278, %s279
      %p283 = pneg %p277
      %p284 = scmp.eq.s32.totalorder %s22, 3
      %p285 = por %p283, %p284
      %p286 = scmp.ne.s32.totalorder %s278, %s281
      %p287 = scmp.eq.s32.totalorder %s22, 0
      %p288 = por %p286, %p287
      %p289 = scmp.ne.s32.totalorder %s278, %s281
      %p290 = scmp.eq.s32.totalorder %s27, 3
      %p291 = por %p289, %p290
      %p292 = scmp.ne.s32.totalorder %s281, %s282
      %p293 = scmp.eq.s32.totalorder %s27, 0
      %p294 = por %p292, %p293
      %p295 = scmp.ne.s32.totalorder %s281, %s282
      %p296 = scmp.eq.s32.totalorder %s28, 3
      %p297 = por %p295, %p296
      %p299 = scmp.ne.s32.totalorder %s282, %s298
      %p300 = scmp.eq.s32.totalorder %s28, 0
      %p301 = por %p299, %p300
      %s302 = ssub.s32 %s29, %s41
      %p303 = scmp.eq.s32.totalorder %s302, 0
      %s305 = sadd.s32 %s304, 1
      %s306 = scalar_select %p303, %s304, %s305
      %p309 = pneg %p303
      %p310 = scmp.eq.s32.totalorder %s22, 3
      %p311 = por %p309, %p310
      %p312 = scmp.ne.s32.totalorder %s304, %s307
      %p313 = scmp.eq.s32.totalorder %s22, 0
      %p314 = por %p312, %p313
      %p315 = scmp.ne.s32.totalorder %s304, %s307
      %p316 = scmp.eq.s32.totalorder %s27, 3
      %p317 = por %p315, %p316
      %p318 = scmp.ne.s32.totalorder %s307, %s308
      %p319 = scmp.eq.s32.totalorder %s27, 0
      %p320 = por %p318, %p319
      %p321 = scmp.ne.s32.totalorder %s307, %s308
      %p322 = scmp.eq.s32.totalorder %s28, 3
      %p323 = por %p321, %p322
      %p325 = scmp.ne.s32.totalorder %s308, %s324
      %p326 = scmp.eq.s32.totalorder %s28, 0
      %p327 = por %p325, %p326
      %p328 = scmp.le.s32.totalorder 1, %s22
      %p329 = scmp.lt.s32.totalorder %s22, 5
      %p330 = pnand %p328, %p329
      %p331 = pneg %p330
      // Predicated region
      $region9: #{tpu_custom_call.1} parent=5 // pred_check
        _
      $region10: #{tpu_custom_call.1} parent=5 // pred_check_branch
        %333 = sbr.rel (%p330) target = $region12
      $region11: #{tpu_custom_call.1} parent=5 // pred_region
        %s334 = ssub.s32 %s22, 1
      $region12: #{tpu_custom_call.1} parent=5 // pred_fallthru
        _
      %p335 = scmp.lt.s32.totalorder %s22, 4
      // Predicated region
      $region13: #{tpu_custom_call.1} parent=5 // pred_check
        %p336 = pneg %p335
      $region14: #{tpu_custom_call.1} parent=5 // pred_check_branch
        %338 = sbr.rel (%p336) target = $region16
      $region15: #{tpu_custom_call.1} parent=5 // pred_region
        // Predicated region
        $region17: #{tpu_custom_call.1} parent=15 // pred_check
          %p339 = pneg %p54
        $region18: #{tpu_custom_call.1} parent=15 // pred_check_branch
          %341 = sbr.rel (%p339) target = $region20
        $region19: #{tpu_custom_call.1} parent=15 // pred_region
          %p342 = scmp.lt.s32.totalorder %s29, 1
          %s343 = scalar_select %p342, %s29, 1
          %s344 = smul.addr %s343, 8
          %s345 = scalar_lea.vmem %s0, %s344
        $region20: #{tpu_custom_call.1} parent=15 // pred_fallthru
          _
        // Predicated region
        $region21: #{tpu_custom_call.1} parent=15 // pred_check
          %p346 = pneg %p80
        $region22: #{tpu_custom_call.1} parent=15 // pred_check_branch
          %348 = sbr.rel (%p346) target = $region24
        $region23: #{tpu_custom_call.1} parent=15 // pred_region
          %s349 = sand.u32 %s70, 1
          %s350 = scalar_lea.sflag [#allocation7], %s349
          %s351 = sand.u32 %s70, 1
          %s352 = smul.addr %s351, 8
          %s353 = scalar_lea.vmem [#allocation6], %s352
          %s355 = ssub.s32 128, 128
          %356 = vsyncadd %s350, %s355
          %s357 = smul.addr %s29, 128
          %s358 = scalar_lea.hbm %s1, %s357
          %s360 = sshll.u32 %s353, 4
          %s361 = int_to_ptr.vmem [resolvable:$true] %s360
          %363 = dma.hbm_to_vmem [thread:$0]  %s358, 128, %s361, %s350
        $region24: #{tpu_custom_call.1} parent=15 // pred_fallthru
          _
        // Predicated region
        $region25: #{tpu_custom_call.1} parent=15 // pred_check
          %p364 = pneg %p106
        $region26: #{tpu_custom_call.1} parent=15 // pred_check_branch
          %366 = sbr.rel (%p364) target = $region28
        $region27: #{tpu_custom_call.1} parent=15 // pred_region
          %p367 = scmp.lt.s32.totalorder %s29, 1
          %s368 = scalar_select %p367, %s29, 1
          %s369 = scalar_lea.vmem %s2, %s368
        $region28: #{tpu_custom_call.1} parent=15 // pred_fallthru
          _
        // Predicated region
        $region29: #{tpu_custom_call.1} parent=15 // pred_check
          %p370 = pneg %p132
        $region30: #{tpu_custom_call.1} parent=15 // pred_check_branch
          %372 = sbr.rel (%p370) target = $region32
        $region31: #{tpu_custom_call.1} parent=15 // pred_region
          %p373 = scmp.lt.s32.totalorder %s30, 1
          %s374 = scalar_select %p373, %s30, 1
          %s375 = smul.addr %s374, 4
          %s376 = smul.addr %s375, 4
          %s377 = scalar_lea.vmem %s3, %s376
        $region32: #{tpu_custom_call.1} parent=15 // pred_fallthru
          _
        // Predicated region
        $region33: #{tpu_custom_call.1} parent=15 // pred_check
          %p378 = pneg %p158
        $region34: #{tpu_custom_call.1} parent=15 // pred_check_branch
          %380 = sbr.rel (%p378) target = $region36
        $region35: #{tpu_custom_call.1} parent=15 // pred_region
          %p381 = scmp.lt.s32.totalorder %s30, 1
          %s382 = scalar_select %p381, %s30, 1
          %s383 = smul.addr %s382, 4
          %s384 = smul.addr %s383, 4
          %s385 = scalar_lea.vmem %s4, %s384
        $region36: #{tpu_custom_call.1} parent=15 // pred_fallthru
          _
        // Predicated region
        $region37: #{tpu_custom_call.1} parent=15 // pred_check
          %p386 = pneg %p184
        $region38: #{tpu_custom_call.1} parent=15 // pred_check_branch
          %388 = sbr.rel (%p386) target = $region40
        $region39: #{tpu_custom_call.1} parent=15 // pred_region
          %p389 = scmp.lt.s32.totalorder %s30, 1
          %s390 = scalar_select %p389, %s30, 1
          %s391 = smul.addr %s390, 4
          %s392 = smul.addr %s391, 4
          %s393 = scalar_lea.vmem %s5, %s392
        $region40: #{tpu_custom_call.1} parent=15 // pred_fallthru
          _
        // Predicated region
        $region41: #{tpu_custom_call.1} parent=15 // pred_check
          %p394 = pneg %p210
        $region42: #{tpu_custom_call.1} parent=15 // pred_check_branch
          %396 = sbr.rel (%p394) target = $region44
        $region43: #{tpu_custom_call.1} parent=15 // pred_region
          %p397 = scmp.lt.s32.totalorder %s30, 1
          %s398 = scalar_select %p397, %s30, 1
          %s399 = smul.addr %s398, 4
          %s400 = smul.addr %s399, 4
          %s401 = scalar_lea.vmem %s6, %s400
        $region44: #{tpu_custom_call.1} parent=15 // pred_fallthru
          _
        // Predicated region
        $region45: #{tpu_custom_call.1} parent=15 // pred_check
          %p402 = pneg %p236
        $region46: #{tpu_custom_call.1} parent=15 // pred_check_branch
          %404 = sbr.rel (%p402) target = $region48
        $region47: #{tpu_custom_call.1} parent=15 // pred_region
          %p405 = scmp.lt.s32.totalorder %s30, 1
          %s406 = scalar_select %p405, %s30, 1
          %s407 = smul.addr %s406, 8
          %s408 = smul.addr %s407, 4
          %s409 = scalar_lea.vmem %s7, %s408
        $region48: #{tpu_custom_call.1} parent=15 // pred_fallthru
          _
        // Predicated region
        $region49: #{tpu_custom_call.1} parent=15 // pred_check
          %p410 = pneg %p262
        $region50: #{tpu_custom_call.1} parent=15 // pred_check_branch
          %412 = sbr.rel (%p410) target = $region52
        $region51: #{tpu_custom_call.1} parent=15 // pred_region
          %p413 = scmp.lt.s32.totalorder %s30, 1
          %s414 = scalar_select %p413, %s30, 1
          %s415 = smul.addr %s414, 2
          %s416 = smul.addr %s415, 8
          %s417 = scalar_lea.vmem %s8, %s416
        $region52: #{tpu_custom_call.1} parent=15 // pred_fallthru
          _
        // Predicated region
        $region53: #{tpu_custom_call.1} parent=15 // pred_check
          %p418 = pneg %p288
        $region54: #{tpu_custom_call.1} parent=15 // pred_check_branch
          %420 = sbr.rel (%p418) target = $region56
        $region55: #{tpu_custom_call.1} parent=15 // pred_region
          %p421 = scmp.lt.s32.totalorder %s30, 1
          %s422 = scalar_select %p421, %s30, 1
          %s423 = scalar_lea.vmem %s9, %s422
        $region56: #{tpu_custom_call.1} parent=15 // pred_fallthru
          _
      $region16: #{tpu_custom_call.1} parent=5 // pred_fallthru
        _
      %p424 = scmp.le.s32.totalorder 1, %s22
      %p425 = scmp.lt.s32.totalorder %s22, 5
      %p426 = pnand %p424, %p425
      %p427 = pneg %p426
      // Predicated region
      $region57: #{tpu_custom_call.1} parent=5 // pred_check
        _
      $region58: #{tpu_custom_call.1} parent=5 // pred_check_branch
        %429 = sbr.rel (%p426) target = $region60
      $region59: #{tpu_custom_call.1} parent=5 // pred_region
        %s430 = ssub.s32 %s22, 1
        %s431 = sand.u32 %s73, 1
        %s432 = scalar_lea.sflag [#allocation7], %s431
        %s433 = sand.u32 %s73, 1
        %s434 = smul.addr %s433, 8
        %s435 = scalar_lea.vmem [#allocation6], %s434
        // Predicated region
        $region61: #{tpu_custom_call.1} parent=59 // pred_check
          %p436 = pneg %p86
        $region62: #{tpu_custom_call.1} parent=59 // pred_check_branch
          %438 = sbr.rel (%p436) target = $region64
        $region63: #{tpu_custom_call.1} parent=59 // pred_region
          %439 = dma.done %s432, 128
        $region64: #{tpu_custom_call.1} parent=59 // pred_fallthru
          _
        %p440 = scmp.lt.s32.totalorder %s31, 1
        %s441 = scalar_select %p440, %s31, 1
        %s442 = smul.addr %s441, 8
        %s443 = scalar_lea.vmem %s0, %s442
        %p444 = pneg %p60
        %p445 = pneg %p57
        %s446 = sand.u32 %s73, 1
        %s447 = scalar_lea.sflag [#allocation7], %s446
        %s448 = sand.u32 %s73, 1
        %s449 = smul.addr %s448, 8
        %s450 = scalar_lea.vmem [#allocation6], %s449
        %p451 = pneg %p86
        %p452 = pneg %p83
        %p453 = scmp.lt.s32.totalorder %s31, 1
        %s454 = scalar_select %p453, %s31, 1
        %s455 = scalar_lea.vmem %s2, %s454
        %p456 = pneg %p112
        %p457 = pneg %p109
        %p458 = scmp.lt.s32.totalorder %s32, 1
        %s459 = scalar_select %p458, %s32, 1
        %s460 = smul.addr %s459, 4
        %s461 = smul.addr %s460, 4
        %s462 = scalar_lea.vmem %s3, %s461
        %p463 = pneg %p138
        %p464 = pneg %p135
        %p465 = scmp.lt.s32.totalorder %s32, 1
        %s466 = scalar_select %p465, %s32, 1
        %s467 = smul.addr %s466, 4
        %s468 = smul.addr %s467, 4
        %s469 = scalar_lea.vmem %s4, %s468
        %p470 = pneg %p164
        %p471 = pneg %p161
        %p472 = scmp.lt.s32.totalorder %s32, 1
        %s473 = scalar_select %p472, %s32, 1
        %s474 = smul.addr %s473, 4
        %s475 = smul.addr %s474, 4
        %s476 = scalar_lea.vmem %s5, %s475
        %p477 = pneg %p190
        %p478 = pneg %p187
        %p479 = scmp.lt.s32.totalorder %s32, 1
        %s480 = scalar_select %p479, %s32, 1
        %s481 = smul.addr %s480, 4
        %s482 = smul.addr %s481, 4
        %s483 = scalar_lea.vmem %s6, %s482
        %p484 = pneg %p216
        %p485 = pneg %p213
        %p486 = scmp.lt.s32.totalorder %s32, 1
        %s487 = scalar_select %p486, %s32, 1
        %s488 = smul.addr %s487, 8
        %s489 = smul.addr %s488, 4
        %s490 = scalar_lea.vmem %s7, %s489
        %p491 = pneg %p242
        %p492 = pneg %p239
        %p493 = scmp.lt.s32.totalorder %s32, 1
        %s494 = scalar_select %p493, %s32, 1
        %s495 = smul.addr %s494, 2
        %s496 = smul.addr %s495, 8
        %s497 = scalar_lea.vmem %s8, %s496
        %p498 = pneg %p268
        %p499 = pneg %p265
        %p500 = scmp.lt.s32.totalorder %s32, 1
        %s501 = scalar_select %p500, %s32, 1
        %s502 = scalar_lea.vmem %s9, %s501
        %p503 = pneg %p294
        %p504 = pneg %p291
        %p505 = pneg %p320
        %p506 = pneg %p317
        %s507 = sand.u32 %s307, 1
        %s508 = scalar_lea.sflag [#allocation8], %s507
        %s509 = sand.u32 %s307, 1
        %s510 = smul.addr %s509, 8
        %s511 = scalar_lea.vmem [#allocation9], %s510
        %p512 = scmp.lt.s32.totalorder %s31, 1
        %s513 = scalar_select %p512, %s31, 1
        %s514 = smul.addr %s513, 8
        %s515 = scalar_lea.vmem %s0, %s514
        %p516 = scmp.lt.s32.totalorder %s31, 1
        %s517 = scalar_select %p516, %s31, 1
        %s518 = scalar_lea.vmem %s2, %s517
        %p519 = scmp.lt.s32.totalorder %s32, 1
        %s520 = scalar_select %p519, %s32, 1
        %s521 = smul.addr %s520, 4
        %s522 = smul.addr %s521, 4
        %s523 = scalar_lea.vmem %s3, %s522
        %p524 = scmp.lt.s32.totalorder %s32, 1
        %s525 = scalar_select %p524, %s32, 1
        %s526 = smul.addr %s525, 4
        %s527 = smul.addr %s526, 4
        %s528 = scalar_lea.vmem %s4, %s527
        %p529 = scmp.lt.s32.totalorder %s32, 1
        %s530 = scalar_select %p529, %s32, 1
        %s531 = smul.addr %s530, 4
        %s532 = smul.addr %s531, 4
        %s533 = scalar_lea.vmem %s5, %s532
        %p534 = scmp.lt.s32.totalorder %s32, 1
        %s535 = scalar_select %p534, %s32, 1
        %s536 = smul.addr %s535, 4
        %s537 = smul.addr %s536, 4
        %s538 = scalar_lea.vmem %s6, %s537
        %p539 = scmp.lt.s32.totalorder %s32, 1
        %s540 = scalar_select %p539, %s32, 1
        %s541 = smul.addr %s540, 8
        %s542 = smul.addr %s541, 4
        %s543 = scalar_lea.vmem %s7, %s542
        %p544 = scmp.lt.s32.totalorder %s32, 1
        %s545 = scalar_select %p544, %s32, 1
        %s546 = smul.addr %s545, 2
        %s547 = smul.addr %s546, 8
        %s548 = scalar_lea.vmem %s8, %s547
        %p549 = scmp.lt.s32.totalorder %s32, 1
        %s550 = scalar_select %p549, %s32, 1
        %s551 = scalar_lea.vmem %s9, %s550
        %p553 = scmp.eq.s32.totalorder %s32, 0
        // Predicated region
        $region65: #{tpu_custom_call.1} parent=59 // pred_check
          %p554 = pneg %p553
        $region66: #{tpu_custom_call.1} parent=59 // pred_check_branch
          %556 = sbr.rel (%p554) target = $region68
        $region67: #{tpu_custom_call.1} parent=59 // pred_region
          %v557 = vld [vmem:[%s515] sm:$0xff]
          %vm558 = vcmask 261120
          %559 = vst.msk [vmem:[#allocation2] sm:$0xff] %vm558, %v557
        $region68: #{tpu_custom_call.1} parent=59 // pred_fallthru
          _
        %v560 = vld [vmem:[#allocation2] sm:$0xff]
        %v561 = vld [vmem:[%s435] sm:$0xff]
        %v562 = vld [vmem:[%s518] sm:$0x1]
        %v563 = vld [vmem:[%s548] sm:$0xff]
        %v564 = vld [vmem:[%s548 + $0x8] sm:$0x1]
        %v565 = vld [vmem:[%s551] sm:$0x1]
        %v566 = vpack.c.bf16 %v560, %v560
        %v567 = vadd.f32 %v560, %v561
        %v568 = vpack.c.bf16 %v567, %v567
        %v569 = vld [vmem:[%s523] sm:$0xf]
        %v570 = vld [vmem:[%s523 + $0x4] sm:$0xf]
        %v571 = vld [vmem:[%s523 + $0x8] sm:$0xf]
        %v572 = vld [vmem:[%s523 + $0xc] sm:$0xf]
        %v577 = vunpack.c.l.b16 %v569
        %v578 = vunpack.c.l.b16 %v570
        %v579 = vunpack.c.l.b16 %v571
        %v580 = vunpack.c.l.b16 %v572
        %v581 = vpack.c.b16 %v578, %v577
        %v582 = vpack.c.b16 %v580, %v579
        %vm585 = vcmask 261120
        %v587 = vsel %vm585, %v568, 0
        %589 = vmatprep.subr.bf16.mxu0 0
        %590 = vmatpush1.bf16.msra.mxu0 0
        %591 = vmatprep.subr.bf16.mxu0 0
        %592 = vmatpush1.bf16.msra.mxu0 0
        %593 = vmatprep.subr.bf16.mxu0 0
        %594 = vmatpush1.bf16.msra.mxu0 0
        %595 = vmatprep.subr.bf16.mxu0 0
        %596 = vmatpush1.bf16.msra.mxu0 0
        %597 = vmatprep.subr.bf16.mxu0 0
        %598 = vmatpush1.bf16.msra.mxu0 0
        %599 = vmatprep.subr.bf16.mxu0 0
        %600 = vmatpush1.bf16.msra.mxu0 0
        %601 = vmatprep.subr.bf16.mxu0 0
        %602 = vmatpush1.bf16.msra.mxu0 %v582
        %603 = vmatprep.subr.bf16.mxu0 0
        %604 = vmatpush1.bf16.msra.mxu0 %v581
        %605 = vmatprep.subr.bf16.mxu0 0
        %606 = vmatpush2.bf16.msra.mxu0 0
        %607 = vmatprep.subr.bf16.mxu0 0
        %608 = vmatpush2.bf16.msra.mxu0 0
        %609 = vmatprep.subr.bf16.mxu0 0
        %610 = vmatpush2.bf16.msra.mxu0 0
        %611 = vmatprep.subr.bf16.mxu0 0
        %612 = vmatpush2.bf16.msra.mxu0 0
        %613 = vmatprep.subr.bf16.mxu0 0
        %614 = vmatpush2.bf16.msra.mxu0 0
        %615 = vmatprep.subr.bf16.mxu0 0
        %616 = vmatpush2.bf16.msra.mxu0 0
        %617 = vmatprep.subr.bf16.mxu0 0
        %618 = vmatpush2.bf16.msra.mxu0 0
        %619 = vmatprep.subr.bf16.mxu0 0
        %620 = vmatpush2.bf16.msra.mxu0 0
        %621 = vmatprep.mubr.bf16.mxu0 0
        %622 = vmatmul.mubr.bf16.gmra.mxu0 %v587
        %v623 = vpop.f32.mrf.mxu0
        %v624 = vadd.f32 0.0, %v623
        %v625 = vpop.f32.mrf.mxu0
        %v626 = vpop.f32.mrf.mxu0
        %v627 = vpop.f32.mrf.mxu0
        %628 = vdwg.mxu0
        %v629 = vlaneseq
        %v630 = vshrl.u32 %v629, 7
        %v631 = vsub.s32 0, %v630
        %v632 = vrot.slane %v563, %v631
        %v633 = vadd.f32 %v624, %v632
        %v634 = vlaneseq
        %v635 = vshrl.u32 %v634, 7
        %v636 = vsub.s32 1, %v635
        %v637 = vrot.slane %v563, %v636
        %639 = vrot.lane.b32.xlu0 %v637, 32
        %v640 = vpop.permute.xlu0 %639
        %v642 = vadd.f32 %v624, %v640
        %v643 = vld [vmem:[%s528] sm:$0xf]
        %v644 = vld [vmem:[%s528 + $0x4] sm:$0xf]
        %v645 = vld [vmem:[%s528 + $0x8] sm:$0xf]
        %v646 = vld [vmem:[%s528 + $0xc] sm:$0xf]
        %v647 = vlaneseq
        %v648 = vshrl.u32 %v647, 7
        %v649 = vsub.s32 2, %v648
        %v650 = vrot.slane %v563, %v649
        %v655 = vunpack.c.l.b16 %v643
        %v656 = vunpack.c.l.b16 %v644
        %v657 = vunpack.c.l.b16 %v645
        %v658 = vunpack.c.l.b16 %v646
        %v659 = vpack.c.b16 %v656, %v655
        %v660 = vpack.c.b16 %v658, %v657
        %v664 = vsel %vm585, %v566, 0
        %666 = vmatprep.subr.bf16.mxu0 0
        %667 = vmatpush1.bf16.msra.mxu0 0
        %668 = vmatprep.subr.bf16.mxu0 0
        %669 = vmatpush1.bf16.msra.mxu0 0
        %670 = vmatprep.subr.bf16.mxu0 0
        %671 = vmatpush1.bf16.msra.mxu0 0
        %672 = vmatprep.subr.bf16.mxu0 0
        %673 = vmatpush1.bf16.msra.mxu0 0
        %674 = vmatprep.subr.bf16.mxu0 0
        %675 = vmatpush1.bf16.msra.mxu0 0
        %676 = vmatprep.subr.bf16.mxu0 0
        %677 = vmatpush1.bf16.msra.mxu0 0
        %678 = vmatprep.subr.bf16.mxu0 0
        %679 = vmatpush1.bf16.msra.mxu0 %v660
        %680 = vmatprep.subr.bf16.mxu0 0
        %681 = vmatpush1.bf16.msra.mxu0 %v659
        %682 = vmatprep.subr.bf16.mxu0 0
        %683 = vmatpush2.bf16.msra.mxu0 0
        %684 = vmatprep.subr.bf16.mxu0 0
        %685 = vmatpush2.bf16.msra.mxu0 0
        %686 = vmatprep.subr.bf16.mxu0 0
        %687 = vmatpush2.bf16.msra.mxu0 0
        %688 = vmatprep.subr.bf16.mxu0 0
        %689 = vmatpush2.bf16.msra.mxu0 0
        %690 = vmatprep.subr.bf16.mxu0 0
        %691 = vmatpush2.bf16.msra.mxu0 0
        %692 = vmatprep.subr.bf16.mxu0 0
        %693 = vmatpush2.bf16.msra.mxu0 0
        %694 = vmatprep.subr.bf16.mxu0 0
        %695 = vmatpush2.bf16.msra.mxu0 0
        %696 = vmatprep.subr.bf16.mxu0 0
        %697 = vmatpush2.bf16.msra.mxu0 0
        %698 = vmatprep.mubr.bf16.mxu0 0
        %699 = vmatmul.mubr.bf16.gmra.mxu0 %v664
        %v700 = vpop.f32.mrf.mxu0
        %v701 = vadd.f32 %v650, %v700
        %v702 = vpop.f32.mrf.mxu0
        %v703 = vpop.f32.mrf.mxu0
        %v704 = vpop.f32.mrf.mxu0
        %705 = vdwg.mxu0
        %v706 = vld [vmem:[%s533] sm:$0xf]
        %v707 = vld [vmem:[%s533 + $0x4] sm:$0xf]
        %v708 = vld [vmem:[%s533 + $0x8] sm:$0xf]
        %v709 = vld [vmem:[%s533 + $0xc] sm:$0xf]
        %v710 = vpack.c.bf16 %v633, %v633
        %vm711 = vcmask 60416
        %712 = vst.msk [vmem:[#allocation3] sm:$0xf] %vm711, %v710
        %v713 = vpack.c.bf16 %v642, %v642
        %v715 = vunpack.c.l.b16 %v713
        %v716 = vpack.c.b16 %v715, %v715
        %717 = vrot.lane.b32.xlu0 %v716, 96
        %v718 = vpop.permute.xlu0 %717
        %720 = vst.msk [vmem:[#allocation4] sm:$0xf] %vm711, %v718
        %v721 = vpack.c.bf16 %v701, %v701
        %vm722 = vcmask 64512
        %v724 = vsel %vm722, %v721, 0
        %vm726 = vcmask 1043456
        %v728 = vsel %vm726, %v706, 0
        %730 = vmatprep.subr.bf16.mxu0 0
        %731 = vmatpush1.bf16.msra.mxu0 0
        %732 = vmatprep.subr.bf16.mxu0 0
        %733 = vmatpush1.bf16.msra.mxu0 0
        %734 = vmatprep.subr.bf16.mxu0 0
        %735 = vmatpush1.bf16.msra.mxu0 0
        %736 = vmatprep.subr.bf16.mxu0 0
        %737 = vmatpush1.bf16.msra.mxu0 0
        %738 = vmatprep.subr.bf16.mxu0 0
        %739 = vmatpush1.bf16.msra.mxu0 0
        %740 = vmatprep.subr.bf16.mxu0 0
        %741 = vmatpush1.bf16.msra.mxu0 0
        %742 = vmatprep.subr.bf16.mxu0 0
        %743 = vmatpush1.bf16.msra.mxu0 0
        %744 = vmatprep.subr.bf16.mxu0 0
        %745 = vmatpush1.bf16.msra.mxu0 %v728
        %746 = vmatprep.subr.bf16.mxu0 0
        %747 = vmatpush2.bf16.msra.mxu0 0
        %748 = vmatprep.subr.bf16.mxu0 0
        %749 = vmatpush2.bf16.msra.mxu0 0
        %750 = vmatprep.subr.bf16.mxu0 0
        %751 = vmatpush2.bf16.msra.mxu0 0
        %752 = vmatprep.subr.bf16.mxu0 0
        %753 = vmatpush2.bf16.msra.mxu0 0
        %754 = vmatprep.subr.bf16.mxu0 0
        %755 = vmatpush2.bf16.msra.mxu0 0
        %756 = vmatprep.subr.bf16.mxu0 0
        %757 = vmatpush2.bf16.msra.mxu0 0
        %758 = vmatprep.subr.bf16.mxu0 0
        %759 = vmatpush2.bf16.msra.mxu0 0
        %760 = vmatprep.subr.bf16.mxu0 0
        %761 = vmatpush2.bf16.msra.mxu0 0
        %762 = vmatprep.mubr.bf16.mxu0 0
        %763 = vmatmul.mubr.bf16.gmra.mxu0 %v724
        %v764 = vpop.f32.mrf.mxu0
        %v765 = vadd.f32 0.0, %v764
        %v766 = vpop.f32.mrf.mxu0
        %v767 = vpop.f32.mrf.mxu0
        %v768 = vpop.f32.mrf.mxu0
        %769 = vdwg.mxu0
        %v770 = vpack.c.bf16 %v765, %v765
        %vm771 = vcmask 257024
        %772 = vst.msk [vmem:[#allocation5] sm:$0xf] %vm771, %v770
        %v774 = vunpack.c.l.b16 %v710
        %v775 = vpack.c.b16 %v774, %v774
        %776 = vrot.lane.b32.xlu0 %v775, 120
        %v777 = vpop.permute.xlu0 %776
        %s779 = scalar_lea.vmem [#allocation3], 4
        %780 = vst.msk [vmem:[%s779] sm:$0xf] %vm711, %v777
        %781 = vrot.lane.b32.xlu0 %v716, 88
        %v782 = vpop.permute.xlu0 %781
        %s784 = scalar_lea.vmem [#allocation4], 4
        %785 = vst.msk [vmem:[%s784] sm:$0xf] %vm711, %v782
        %787 = vrot.lane.b32.xlu0 %v721, 120
        %v788 = vpop.permute.xlu0 %787
        %v790 = vsel %vm722, %v788, 0
        %v793 = vsel %vm726, %v707, 0
        %795 = vmatprep.subr.bf16.mxu0 0
        %796 = vmatpush1.bf16.msra.mxu0 0
        %797 = vmatprep.subr.bf16.mxu0 0
        %798 = vmatpush1.bf16.msra.mxu0 0
        %799 = vmatprep.subr.bf16.mxu0 0
        %800 = vmatpush1.bf16.msra.mxu0 0
        %801 = vmatprep.subr.bf16.mxu0 0
        %802 = vmatpush1.bf16.msra.mxu0 0
        %803 = vmatprep.subr.bf16.mxu0 0
        %804 = vmatpush1.bf16.msra.mxu0 0
        %805 = vmatprep.subr.bf16.mxu0 0
        %806 = vmatpush1.bf16.msra.mxu0 0
        %807 = vmatprep.subr.bf16.mxu0 0
        %808 = vmatpush1.bf16.msra.mxu0 0
        %809 = vmatprep.subr.bf16.mxu0 0
        %810 = vmatpush1.bf16.msra.mxu0 %v793
        %811 = vmatprep.subr.bf16.mxu0 0
        %812 = vmatpush2.bf16.msra.mxu0 0
        %813 = vmatprep.subr.bf16.mxu0 0
        %814 = vmatpush2.bf16.msra.mxu0 0
        %815 = vmatprep.subr.bf16.mxu0 0
        %816 = vmatpush2.bf16.msra.mxu0 0
        %817 = vmatprep.subr.bf16.mxu0 0
        %818 = vmatpush2.bf16.msra.mxu0 0
        %819 = vmatprep.subr.bf16.mxu0 0
        %820 = vmatpush2.bf16.msra.mxu0 0
        %821 = vmatprep.subr.bf16.mxu0 0
        %822 = vmatpush2.bf16.msra.mxu0 0
        %823 = vmatprep.subr.bf16.mxu0 0
        %824 = vmatpush2.bf16.msra.mxu0 0
        %825 = vmatprep.subr.bf16.mxu0 0
        %826 = vmatpush2.bf16.msra.mxu0 0
        %827 = vmatprep.mubr.bf16.mxu0 0
        %828 = vmatmul.mubr.bf16.gmra.mxu0 %v790
        %v829 = vpop.f32.mrf.mxu0
        %v830 = vadd.f32 0.0, %v829
        %v831 = vpop.f32.mrf.mxu0
        %v832 = vpop.f32.mrf.mxu0
        %v833 = vpop.f32.mrf.mxu0
        %834 = vdwg.mxu0
        %v835 = vpack.c.bf16 %v830, %v830
        %s836 = scalar_lea.vmem [#allocation5], 4
        %837 = vst.msk [vmem:[%s836] sm:$0xf] %vm771, %v835
        %838 = vrot.lane.b32.xlu0 %v775, 112
        %v839 = vpop.permute.xlu0 %838
        %s841 = scalar_lea.vmem [#allocation3], 8
        %842 = vst.msk [vmem:[%s841] sm:$0xf] %vm711, %v839
        %843 = vrot.lane.b32.xlu0 %v716, 80
        %v844 = vpop.permute.xlu0 %843
        %s846 = scalar_lea.vmem [#allocation4], 8
        %847 = vst.msk [vmem:[%s846] sm:$0xf] %vm711, %v844
        %848 = vrot.lane.b32.xlu0 %v721, 112
        %v849 = vpop.permute.xlu0 %848
        %v851 = vsel %vm722, %v849, 0
        %v854 = vsel %vm726, %v708, 0
        %856 = vmatprep.subr.bf16.mxu0 0
        %857 = vmatpush1.bf16.msra.mxu0 0
        %858 = vmatprep.subr.bf16.mxu0 0
        %859 = vmatpush1.bf16.msra.mxu0 0
        %860 = vmatprep.subr.bf16.mxu0 0
        %861 = vmatpush1.bf16.msra.mxu0 0
        %862 = vmatprep.subr.bf16.mxu0 0
        %863 = vmatpush1.bf16.msra.mxu0 0
        %864 = vmatprep.subr.bf16.mxu0 0
        %865 = vmatpush1.bf16.msra.mxu0 0
        %866 = vmatprep.subr.bf16.mxu0 0
        %867 = vmatpush1.bf16.msra.mxu0 0
        %868 = vmatprep.subr.bf16.mxu0 0
        %869 = vmatpush1.bf16.msra.mxu0 0
        %870 = vmatprep.subr.bf16.mxu0 0
        %871 = vmatpush1.bf16.msra.mxu0 %v854
        %872 = vmatprep.subr.bf16.mxu0 0
        %873 = vmatpush2.bf16.msra.mxu0 0
        %874 = vmatprep.subr.bf16.mxu0 0
        %875 = vmatpush2.bf16.msra.mxu0 0
        %876 = vmatprep.subr.bf16.mxu0 0
        %877 = vmatpush2.bf16.msra.mxu0 0
        %878 = vmatprep.subr.bf16.mxu0 0
        %879 = vmatpush2.bf16.msra.mxu0 0
        %880 = vmatprep.subr.bf16.mxu0 0
        %881 = vmatpush2.bf16.msra.mxu0 0
        %882 = vmatprep.subr.bf16.mxu0 0
        %883 = vmatpush2.bf16.msra.mxu0 0
        %884 = vmatprep.subr.bf16.mxu0 0
        %885 = vmatpush2.bf16.msra.mxu0 0
        %886 = vmatprep.subr.bf16.mxu0 0
        %887 = vmatpush2.bf16.msra.mxu0 0
        %888 = vmatprep.mubr.bf16.mxu0 0
        %889 = vmatmul.mubr.bf16.gmra.mxu0 %v851
        %v890 = vpop.f32.mrf.mxu0
        %v891 = vadd.f32 0.0, %v890
        %v892 = vpop.f32.mrf.mxu0
        %v893 = vpop.f32.mrf.mxu0
        %v894 = vpop.f32.mrf.mxu0
        %895 = vdwg.mxu0
        %v896 = vpack.c.bf16 %v891, %v891
        %s897 = scalar_lea.vmem [#allocation5], 8
        %898 = vst.msk [vmem:[%s897] sm:$0xf] %vm771, %v896
        %899 = vrot.lane.b32.xlu0 %v775, 104
        %v900 = vpop.permute.xlu0 %899
        %s902 = scalar_lea.vmem [#allocation3], 12
        %903 = vst.msk [vmem:[%s902] sm:$0xf] %vm711, %v900
        %904 = vrot.lane.b32.xlu0 %v716, 72
        %v905 = vpop.permute.xlu0 %904
        %s907 = scalar_lea.vmem [#allocation4], 12
        %908 = vst.msk [vmem:[%s907] sm:$0xf] %vm711, %v905
        %909 = vrot.lane.b32.xlu0 %v721, 104
        %v910 = vpop.permute.xlu0 %909
        %v912 = vsel %vm722, %v910, 0
        %v915 = vsel %vm726, %v709, 0
        %917 = vmatprep.subr.bf16.mxu0 0
        %918 = vmatpush1.bf16.msra.mxu0 0
        %919 = vmatprep.subr.bf16.mxu0 0
        %920 = vmatpush1.bf16.msra.mxu0 0
        %921 = vmatprep.subr.bf16.mxu0 0
        %922 = vmatpush1.bf16.msra.mxu0 0
        %923 = vmatprep.subr.bf16.mxu0 0
        %924 = vmatpush1.bf16.msra.mxu0 0
        %925 = vmatprep.subr.bf16.mxu0 0
        %926 = vmatpush1.bf16.msra.mxu0 0
        %927 = vmatprep.subr.bf16.mxu0 0
        %928 = vmatpush1.bf16.msra.mxu0 0
        %929 = vmatprep.subr.bf16.mxu0 0
        %930 = vmatpush1.bf16.msra.mxu0 0
        %931 = vmatprep.subr.bf16.mxu0 0
        %932 = vmatpush1.bf16.msra.mxu0 %v915
        %933 = vmatprep.subr.bf16.mxu0 0
        %934 = vmatpush2.bf16.msra.mxu0 0
        %935 = vmatprep.subr.bf16.mxu0 0
        %936 = vmatpush2.bf16.msra.mxu0 0
        %937 = vmatprep.subr.bf16.mxu0 0
        %938 = vmatpush2.bf16.msra.mxu0 0
        %939 = vmatprep.subr.bf16.mxu0 0
        %940 = vmatpush2.bf16.msra.mxu0 0
        %941 = vmatprep.subr.bf16.mxu0 0
        %942 = vmatpush2.bf16.msra.mxu0 0
        %943 = vmatprep.subr.bf16.mxu0 0
        %944 = vmatpush2.bf16.msra.mxu0 0
        %945 = vmatprep.subr.bf16.mxu0 0
        %946 = vmatpush2.bf16.msra.mxu0 0
        %947 = vmatprep.subr.bf16.mxu0 0
        %948 = vmatpush2.bf16.msra.mxu0 0
        %949 = vmatprep.mubr.bf16.mxu0 0
        %950 = vmatmul.mubr.bf16.gmra.mxu0 %v912
        %v951 = vpop.f32.mrf.mxu0
        %v952 = vadd.f32 0.0, %v951
        %v953 = vpop.f32.mrf.mxu0
        %v954 = vpop.f32.mrf.mxu0
        %v955 = vpop.f32.mrf.mxu0
        %956 = vdwg.mxu0
        %v957 = vpack.c.bf16 %v952, %v952
        %s958 = scalar_lea.vmem [#allocation5], 12
        %959 = vst.msk [vmem:[%s958] sm:$0xf] %vm771, %v957
        %v960 = vld [vmem:[#allocation3] sm:$0xf]
        %v961 = vld [vmem:[#allocation3 + $0x4] sm:$0xf]
        %v962 = vld [vmem:[#allocation3 + $0x8] sm:$0xf]
        %v963 = vld [vmem:[#allocation3 + $0xc] sm:$0xf]
        %v964 = vld [vmem:[#allocation4] sm:$0xf]
        %v965 = vld [vmem:[#allocation4 + $0x4] sm:$0xf]
        %v966 = vld [vmem:[#allocation4 + $0x8] sm:$0xf]
        %v967 = vld [vmem:[#allocation4 + $0xc] sm:$0xf]
        %v969 = vlaneseq
        %v970 = vshrl.u32 %v969, 7
        %v971 = vsub.s32 0, %v970
        %v972 = vrot.slane %v562, %v971
        %v975 = vsel %vm722, %v960, 0
        %v978 = vsel %vm722, %v964, 0
        %980 = vmatprep.subr.bf16.mxu0 0
        %981 = vmatpush1.bf16.xpose.msra.mxu0 0
        %982 = vmatprep.subr.bf16.mxu0 0
        %983 = vmatpush1.bf16.xpose.msra.mxu0 0
        %984 = vmatprep.subr.bf16.mxu0 0
        %985 = vmatpush1.bf16.xpose.msra.mxu0 0
        %986 = vmatprep.subr.bf16.mxu0 0
        %987 = vmatpush1.bf16.xpose.msra.mxu0 0
        %988 = vmatprep.subr.bf16.mxu0 0
        %989 = vmatpush1.bf16.xpose.msra.mxu0 0
        %990 = vmatprep.subr.bf16.mxu0 0
        %991 = vmatpush1.bf16.xpose.msra.mxu0 0
        %992 = vmatprep.subr.bf16.mxu0 0
        %993 = vmatpush1.bf16.xpose.msra.mxu0 0
        %994 = vmatprep.subr.bf16.mxu0 0
        %995 = vmatpush1.bf16.xpose.msra.mxu0 %v978
        %996 = vmatprep.subr.bf16.mxu0 0
        %997 = vmatpush2.bf16.xpose.msra.mxu0 0
        %998 = vmatprep.subr.bf16.mxu0 0
        %999 = vmatpush2.bf16.xpose.msra.mxu0 0
        %1000 = vmatprep.subr.bf16.mxu0 0
        %1001 = vmatpush2.bf16.xpose.msra.mxu0 0
        %1002 = vmatprep.subr.bf16.mxu0 0
        %1003 = vmatpush2.bf16.xpose.msra.mxu0 0
        %1004 = vmatprep.subr.bf16.mxu0 0
        %1005 = vmatpush2.bf16.xpose.msra.mxu0 0
        %1006 = vmatprep.subr.bf16.mxu0 0
        %1007 = vmatpush2.bf16.xpose.msra.mxu0 0
        %1008 = vmatprep.subr.bf16.mxu0 0
        %1009 = vmatpush2.bf16.xpose.msra.mxu0 0
        %1010 = vmatprep.subr.bf16.mxu0 0
        %1011 = vmatpush2.bf16.xpose.msra.mxu0 0
        %1012 = vmatprep.mubr.bf16.mxu0 0
        %1013 = vmatmul.mubr.bf16.gmra.mxu0 %v975
        %v1014 = vpop.f32.mrf.mxu0
        %v1015 = vadd.f32 %v972, %v1014
        %v1016 = vpop.f32.mrf.mxu0
        %v1017 = vpop.f32.mrf.mxu0
        %v1018 = vpop.f32.mrf.mxu0
        %1019 = vdwg.mxu0
        %v1021 = vsel %vm722, %v961, 0
        %v1024 = vsel %vm722, %v965, 0
        %1026 = vmatprep.subr.bf16.mxu0 0
        %1027 = vmatpush1.bf16.xpose.msra.mxu0 0
        %1028 = vmatprep.subr.bf16.mxu0 0
        %1029 = vmatpush1.bf16.xpose.msra.mxu0 0
        %1030 = vmatprep.subr.bf16.mxu0 0
        %1031 = vmatpush1.bf16.xpose.msra.mxu0 0
        %1032 = vmatprep.subr.bf16.mxu0 0
        %1033 = vmatpush1.bf16.xpose.msra.mxu0 0
        %1034 = vmatprep.subr.bf16.mxu0 0
        %1035 = vmatpush1.bf16.xpose.msra.mxu0 0
        %1036 = vmatprep.subr.bf16.mxu0 0
        %1037 = vmatpush1.bf16.xpose.msra.mxu0 0
        %1038 = vmatprep.subr.bf16.mxu0 0
        %1039 = vmatpush1.bf16.xpose.msra.mxu0 0
        %1040 = vmatprep.subr.bf16.mxu0 0
        %1041 = vmatpush1.bf16.xpose.msra.mxu0 %v1024
        %1042 = vmatprep.subr.bf16.mxu0 0
        %1043 = vmatpush2.bf16.xpose.msra.mxu0 0
        %1044 = vmatprep.subr.bf16.mxu0 0
        %1045 = vmatpush2.bf16.xpose.msra.mxu0 0
        %1046 = vmatprep.subr.bf16.mxu0 0
        %1047 = vmatpush2.bf16.xpose.msra.mxu0 0
        %1048 = vmatprep.subr.bf16.mxu0 0
        %1049 = vmatpush2.bf16.xpose.msra.mxu0 0
        %1050 = vmatprep.subr.bf16.mxu0 0
        %1051 = vmatpush2.bf16.xpose.msra.mxu0 0
        %1052 = vmatprep.subr.bf16.mxu0 0
        %1053 = vmatpush2.bf16.xpose.msra.mxu0 0
        %1054 = vmatprep.subr.bf16.mxu0 0
        %1055 = vmatpush2.bf16.xpose.msra.mxu0 0
        %1056 = vmatprep.subr.bf16.mxu0 0
        %1057 = vmatpush2.bf16.xpose.msra.mxu0 0
        %1058 = vmatprep.mubr.bf16.mxu0 0
        %1059 = vmatmul.mubr.bf16.gmra.mxu0 %v1021
        %v1060 = vpop.f32.mrf.mxu0
        %v1061 = vadd.f32 %v972, %v1060
        %v1062 = vpop.f32.mrf.mxu0
        %v1063 = vpop.f32.mrf.mxu0
        %v1064 = vpop.f32.mrf.mxu0
        %1065 = vdwg.mxu0
        %v1067 = vsel %vm722, %v962, 0
        %v1070 = vsel %vm722, %v966, 0
        %1072 = vmatprep.subr.bf16.mxu0 0
        %1073 = vmatpush1.bf16.xpose.msra.mxu0 0
        %1074 = vmatprep.subr.bf16.mxu0 0
        %1075 = vmatpush1.bf16.xpose.msra.mxu0 0
        %1076 = vmatprep.subr.bf16.mxu0 0
        %1077 = vmatpush1.bf16.xpose.msra.mxu0 0
        %1078 = vmatprep.subr.bf16.mxu0 0
        %1079 = vmatpush1.bf16.xpose.msra.mxu0 0
        %1080 = vmatprep.subr.bf16.mxu0 0
        %1081 = vmatpush1.bf16.xpose.msra.mxu0 0
        %1082 = vmatprep.subr.bf16.mxu0 0
        %1083 = vmatpush1.bf16.xpose.msra.mxu0 0
        %1084 = vmatprep.subr.bf16.mxu0 0
        %1085 = vmatpush1.bf16.xpose.msra.mxu0 0
        %1086 = vmatprep.subr.bf16.mxu0 0
        %1087 = vmatpush1.bf16.xpose.msra.mxu0 %v1070
        %1088 = vmatprep.subr.bf16.mxu0 0
        %1089 = vmatpush2.bf16.xpose.msra.mxu0 0
        %1090 = vmatprep.subr.bf16.mxu0 0
        %1091 = vmatpush2.bf16.xpose.msra.mxu0 0
        %1092 = vmatprep.subr.bf16.mxu0 0
        %1093 = vmatpush2.bf16.xpose.msra.mxu0 0
        %1094 = vmatprep.subr.bf16.mxu0 0
        %1095 = vmatpush2.bf16.xpose.msra.mxu0 0
        %1096 = vmatprep.subr.bf16.mxu0 0
        %1097 = vmatpush2.bf16.xpose.msra.mxu0 0
        %1098 = vmatprep.subr.bf16.mxu0 0
        %1099 = vmatpush2.bf16.xpose.msra.mxu0 0
        %1100 = vmatprep.subr.bf16.mxu0 0
        %1101 = vmatpush2.bf16.xpose.msra.mxu0 0
        %1102 = vmatprep.subr.bf16.mxu0 0
        %1103 = vmatpush2.bf16.xpose.msra.mxu0 0
        %1104 = vmatprep.mubr.bf16.mxu0 0
        %1105 = vmatmul.mubr.bf16.gmra.mxu0 %v1067
        %v1106 = vpop.f32.mrf.mxu0
        %v1107 = vadd.f32 %v972, %v1106
        %v1108 = vpop.f32.mrf.mxu0
        %v1109 = vpop.f32.mrf.mxu0
        %v1110 = vpop.f32.mrf.mxu0
        %1111 = vdwg.mxu0
        %v1113 = vsel %vm722, %v963, 0
        %v1116 = vsel %vm722, %v967, 0
        %1118 = vmatprep.subr.bf16.mxu0 0
        %1119 = vmatpush1.bf16.xpose.msra.mxu0 0
        %1120 = vmatprep.subr.bf16.mxu0 0
        %1121 = vmatpush1.bf16.xpose.msra.mxu0 0
        %1122 = vmatprep.subr.bf16.mxu0 0
        %1123 = vmatpush1.bf16.xpose.msra.mxu0 0
        %1124 = vmatprep.subr.bf16.mxu0 0
        %1125 = vmatpush1.bf16.xpose.msra.mxu0 0
        %1126 = vmatprep.subr.bf16.mxu0 0
        %1127 = vmatpush1.bf16.xpose.msra.mxu0 0
        %1128 = vmatprep.subr.bf16.mxu0 0
        %1129 = vmatpush1.bf16.xpose.msra.mxu0 0
        %1130 = vmatprep.subr.bf16.mxu0 0
        %1131 = vmatpush1.bf16.xpose.msra.mxu0 0
        %1132 = vmatprep.subr.bf16.mxu0 0
        %1133 = vmatpush1.bf16.xpose.msra.mxu0 %v1116
        %1134 = vmatprep.subr.bf16.mxu0 0
        %1135 = vmatpush2.bf16.xpose.msra.mxu0 0
        %1136 = vmatprep.subr.bf16.mxu0 0
        %1137 = vmatpush2.bf16.xpose.msra.mxu0 0
        %1138 = vmatprep.subr.bf16.mxu0 0
        %1139 = vmatpush2.bf16.xpose.msra.mxu0 0
        %1140 = vmatprep.subr.bf16.mxu0 0
        %1141 = vmatpush2.bf16.xpose.msra.mxu0 0
        %1142 = vmatprep.subr.bf16.mxu0 0
        %1143 = vmatpush2.bf16.xpose.msra.mxu0 0
        %1144 = vmatprep.subr.bf16.mxu0 0
        %1145 = vmatpush2.bf16.xpose.msra.mxu0 0
        %1146 = vmatprep.subr.bf16.mxu0 0
        %1147 = vmatpush2.bf16.xpose.msra.mxu0 0
        %1148 = vmatprep.subr.bf16.mxu0 0
        %1149 = vmatpush2.bf16.xpose.msra.mxu0 0
        %1150 = vmatprep.mubr.bf16.mxu0 0
        %1151 = vmatmul.mubr.bf16.gmra.mxu0 %v1113
        %v1152 = vpop.f32.mrf.mxu0
        %v1153 = vadd.f32 %v972, %v1152
        %v1154 = vpop.f32.mrf.mxu0
        %v1155 = vpop.f32.mrf.mxu0
        %v1156 = vpop.f32.mrf.mxu0
        %1157 = vdwg.mxu0
        %v1158 = vsel %vm722, %v1015, -inf
        %1159 = vmax.xlane.f32.xlu0 %v1158
        %v1160 = vpop.xlane.xlu0 %1159
        %v1161 = vsel %vm722, %v1061, -inf
        %1162 = vmax.xlane.f32.xlu0 %v1161
        %v1163 = vpop.xlane.xlu0 %1162
        %v1164 = vsel %vm722, %v1107, -inf
        %1165 = vmax.xlane.f32.xlu0 %v1164
        %v1166 = vpop.xlane.xlu0 %1165
        %v1167 = vsel %vm722, %v1153, -inf
        %1168 = vmax.xlane.f32.xlu0 %v1167
        %v1169 = vpop.xlane.xlu0 %1168
        %v1170 = vsub.f32 %v1015, %v1160
        %v1171 = vsub.f32 %v1061, %v1163
        %v1172 = vsub.f32 %v1107, %v1166
        %v1173 = vsub.f32 %v1153, %v1169
        %v1174 = vmul.f32 %v1170, 1.442695
        %v1175 = vpow.pop %v1174
        %v1176 = vmul.f32 %v1171, 1.442695
        %v1177 = vpow.pop %v1176
        %v1178 = vmul.f32 %v1172, 1.442695
        %v1179 = vpow.pop %v1178
        %v1180 = vmul.f32 %v1173, 1.442695
        %v1181 = vpow.pop %v1180
        %v1182 = vsel %vm722, %v1175, 0.0
        %1183 = vadd.xlane.f32.xlu0 %v1182
        %v1184 = vpop.xlane.xlu0 %1183
        %v1185 = vsel %vm722, %v1177, 0.0
        %1186 = vadd.xlane.f32.xlu0 %v1185
        %v1187 = vpop.xlane.xlu0 %1186
        %v1188 = vsel %vm722, %v1179, 0.0
        %1189 = vadd.xlane.f32.xlu0 %v1188
        %v1190 = vpop.xlane.xlu0 %1189
        %v1191 = vsel %vm722, %v1181, 0.0
        %1192 = vadd.xlane.f32.xlu0 %v1191
        %v1193 = vpop.xlane.xlu0 %1192
        %v1194 = vrcp.pop %v1184
        %v1195 = vrcp.pop %v1187
        %v1196 = vrcp.pop %v1190
        %v1197 = vrcp.pop %v1193
        %v1198 = vmul.f32 %v1175, %v1194
        %v1199 = vmul.f32 %v1177, %v1195
        %v1200 = vmul.f32 %v1179, %v1196
        %v1201 = vmul.f32 %v1181, %v1197
        %v1202 = vpack.c.bf16 %v1198, %v1198
        %v1203 = vpack.c.bf16 %v1199, %v1199
        %v1204 = vpack.c.bf16 %v1200, %v1200
        %v1205 = vpack.c.bf16 %v1201, %v1201
        %v1206 = vld [vmem:[#allocation5] sm:$0xf]
        %v1207 = vld [vmem:[%s836] sm:$0xf]
        %v1209 = vsel %vm722, %v1203, 0
        %v1212 = vsel %vm726, %v1207, 0
        %1214 = vmatprep.subr.bf16.mxu0 0
        %1215 = vmatpush1.bf16.msra.mxu0 0
        %1216 = vmatprep.subr.bf16.mxu0 0
        %1217 = vmatpush1.bf16.msra.mxu0 0
        %1218 = vmatprep.subr.bf16.mxu0 0
        %1219 = vmatpush1.bf16.msra.mxu0 0
        %1220 = vmatprep.subr.bf16.mxu0 0
        %1221 = vmatpush1.bf16.msra.mxu0 0
        %1222 = vmatprep.subr.bf16.mxu0 0
        %1223 = vmatpush1.bf16.msra.mxu0 0
        %1224 = vmatprep.subr.bf16.mxu0 0
        %1225 = vmatpush1.bf16.msra.mxu0 0
        %1226 = vmatprep.subr.bf16.mxu0 0
        %1227 = vmatpush1.bf16.msra.mxu0 0
        %1228 = vmatprep.subr.bf16.mxu0 0
        %1229 = vmatpush1.bf16.msra.mxu0 %v1212
        %1230 = vmatprep.subr.bf16.mxu0 0
        %1231 = vmatpush2.bf16.msra.mxu0 0
        %1232 = vmatprep.subr.bf16.mxu0 0
        %1233 = vmatpush2.bf16.msra.mxu0 0
        %1234 = vmatprep.subr.bf16.mxu0 0
        %1235 = vmatpush2.bf16.msra.mxu0 0
        %1236 = vmatprep.subr.bf16.mxu0 0
        %1237 = vmatpush2.bf16.msra.mxu0 0
        %1238 = vmatprep.subr.bf16.mxu0 0
        %1239 = vmatpush2.bf16.msra.mxu0 0
        %1240 = vmatprep.subr.bf16.mxu0 0
        %1241 = vmatpush2.bf16.msra.mxu0 0
        %1242 = vmatprep.subr.bf16.mxu0 0
        %1243 = vmatpush2.bf16.msra.mxu0 0
        %1244 = vmatprep.subr.bf16.mxu0 0
        %1245 = vmatpush2.bf16.msra.mxu0 0
        %1246 = vmatprep.mubr.bf16.mxu0 0
        %1247 = vmatmul.mubr.bf16.gmra.mxu0 %v1209
        %v1248 = vpop.f32.mrf.mxu0
        %v1249 = vadd.f32 0.0, %v1248
        %v1250 = vpop.f32.mrf.mxu0
        %v1251 = vpop.f32.mrf.mxu0
        %v1252 = vpop.f32.mrf.mxu0
        %1253 = vdwg.mxu0
        %v1255 = vsel %vm722, %v1202, 0
        %v1258 = vsel %vm726, %v1206, 0
        %1260 = vmatprep.subr.bf16.mxu0 0
        %1261 = vmatpush1.bf16.msra.mxu0 0
        %1262 = vmatprep.subr.bf16.mxu0 0
        %1263 = vmatpush1.bf16.msra.mxu0 0
        %1264 = vmatprep.subr.bf16.mxu0 0
        %1265 = vmatpush1.bf16.msra.mxu0 0
        %1266 = vmatprep.subr.bf16.mxu0 0
        %1267 = vmatpush1.bf16.msra.mxu0 0
        %1268 = vmatprep.subr.bf16.mxu0 0
        %1269 = vmatpush1.bf16.msra.mxu0 0
        %1270 = vmatprep.subr.bf16.mxu0 0
        %1271 = vmatpush1.bf16.msra.mxu0 0
        %1272 = vmatprep.subr.bf16.mxu0 0
        %1273 = vmatpush1.bf16.msra.mxu0 0
        %1274 = vmatprep.subr.bf16.mxu0 0
        %1275 = vmatpush1.bf16.msra.mxu0 %v1258
        %1276 = vmatprep.subr.bf16.mxu0 0
        %1277 = vmatpush2.bf16.msra.mxu0 0
        %1278 = vmatprep.subr.bf16.mxu0 0
        %1279 = vmatpush2.bf16.msra.mxu0 0
        %1280 = vmatprep.subr.bf16.mxu0 0
        %1281 = vmatpush2.bf16.msra.mxu0 0
        %1282 = vmatprep.subr.bf16.mxu0 0
        %1283 = vmatpush2.bf16.msra.mxu0 0
        %1284 = vmatprep.subr.bf16.mxu0 0
        %1285 = vmatpush2.bf16.msra.mxu0 0
        %1286 = vmatprep.subr.bf16.mxu0 0
        %1287 = vmatpush2.bf16.msra.mxu0 0
        %1288 = vmatprep.subr.bf16.mxu0 0
        %1289 = vmatpush2.bf16.msra.mxu0 0
        %1290 = vmatprep.subr.bf16.mxu0 0
        %1291 = vmatpush2.bf16.msra.mxu0 0
        %1292 = vmatprep.mubr.bf16.mxu0 0
        %1293 = vmatmul.mubr.bf16.gmra.mxu0 %v1255
        %v1294 = vpop.f32.mrf.mxu0
        %v1295 = vadd.f32 %v1249, %v1294
        %v1296 = vpop.f32.mrf.mxu0
        %v1297 = vpop.f32.mrf.mxu0
        %v1298 = vpop.f32.mrf.mxu0
        %1299 = vdwg.mxu0
        %v1300 = vld [vmem:[%s897] sm:$0xf]
        %v1302 = vsel %vm722, %v1204, 0
        %v1305 = vsel %vm726, %v1300, 0
        %1307 = vmatprep.subr.bf16.mxu0 0
        %1308 = vmatpush1.bf16.msra.mxu0 0
        %1309 = vmatprep.subr.bf16.mxu0 0
        %1310 = vmatpush1.bf16.msra.mxu0 0
        %1311 = vmatprep.subr.bf16.mxu0 0
        %1312 = vmatpush1.bf16.msra.mxu0 0
        %1313 = vmatprep.subr.bf16.mxu0 0
        %1314 = vmatpush1.bf16.msra.mxu0 0
        %1315 = vmatprep.subr.bf16.mxu0 0
        %1316 = vmatpush1.bf16.msra.mxu0 0
        %1317 = vmatprep.subr.bf16.mxu0 0
        %1318 = vmatpush1.bf16.msra.mxu0 0
        %1319 = vmatprep.subr.bf16.mxu0 0
        %1320 = vmatpush1.bf16.msra.mxu0 0
        %1321 = vmatprep.subr.bf16.mxu0 0
        %1322 = vmatpush1.bf16.msra.mxu0 %v1305
        %1323 = vmatprep.subr.bf16.mxu0 0
        %1324 = vmatpush2.bf16.msra.mxu0 0
        %1325 = vmatprep.subr.bf16.mxu0 0
        %1326 = vmatpush2.bf16.msra.mxu0 0
        %1327 = vmatprep.subr.bf16.mxu0 0
        %1328 = vmatpush2.bf16.msra.mxu0 0
        %1329 = vmatprep.subr.bf16.mxu0 0
        %1330 = vmatpush2.bf16.msra.mxu0 0
        %1331 = vmatprep.subr.bf16.mxu0 0
        %1332 = vmatpush2.bf16.msra.mxu0 0
        %1333 = vmatprep.subr.bf16.mxu0 0
        %1334 = vmatpush2.bf16.msra.mxu0 0
        %1335 = vmatprep.subr.bf16.mxu0 0
        %1336 = vmatpush2.bf16.msra.mxu0 0
        %1337 = vmatprep.subr.bf16.mxu0 0
        %1338 = vmatpush2.bf16.msra.mxu0 0
        %1339 = vmatprep.mubr.bf16.mxu0 0
        %1340 = vmatmul.mubr.bf16.gmra.mxu0 %v1302
        %v1341 = vpop.f32.mrf.mxu0
        %v1342 = vadd.f32 0.0, %v1341
        %v1343 = vpop.f32.mrf.mxu0
        %v1344 = vpop.f32.mrf.mxu0
        %v1345 = vpop.f32.mrf.mxu0
        %1346 = vdwg.mxu0
        %v1347 = vadd.f32 %v1295, %v1342
        %v1348 = vld [vmem:[%s958] sm:$0xf]
        %v1350 = vsel %vm722, %v1205, 0
        %v1353 = vsel %vm726, %v1348, 0
        %1355 = vmatprep.subr.bf16.mxu0 0
        %1356 = vmatpush1.bf16.msra.mxu0 0
        %1357 = vmatprep.subr.bf16.mxu0 0
        %1358 = vmatpush1.bf16.msra.mxu0 0
        %1359 = vmatprep.subr.bf16.mxu0 0
        %1360 = vmatpush1.bf16.msra.mxu0 0
        %1361 = vmatprep.subr.bf16.mxu0 0
        %1362 = vmatpush1.bf16.msra.mxu0 0
        %1363 = vmatprep.subr.bf16.mxu0 0
        %1364 = vmatpush1.bf16.msra.mxu0 0
        %1365 = vmatprep.subr.bf16.mxu0 0
        %1366 = vmatpush1.bf16.msra.mxu0 0
        %1367 = vmatprep.subr.bf16.mxu0 0
        %1368 = vmatpush1.bf16.msra.mxu0 0
        %1369 = vmatprep.subr.bf16.mxu0 0
        %1370 = vmatpush1.bf16.msra.mxu0 %v1353
        %1371 = vmatprep.subr.bf16.mxu0 0
        %1372 = vmatpush2.bf16.msra.mxu0 0
        %1373 = vmatprep.subr.bf16.mxu0 0
        %1374 = vmatpush2.bf16.msra.mxu0 0
        %1375 = vmatprep.subr.bf16.mxu0 0
        %1376 = vmatpush2.bf16.msra.mxu0 0
        %1377 = vmatprep.subr.bf16.mxu0 0
        %1378 = vmatpush2.bf16.msra.mxu0 0
        %1379 = vmatprep.subr.bf16.mxu0 0
        %1380 = vmatpush2.bf16.msra.mxu0 0
        %1381 = vmatprep.subr.bf16.mxu0 0
        %1382 = vmatpush2.bf16.msra.mxu0 0
        %1383 = vmatprep.subr.bf16.mxu0 0
        %1384 = vmatpush2.bf16.msra.mxu0 0
        %1385 = vmatprep.subr.bf16.mxu0 0
        %1386 = vmatpush2.bf16.msra.mxu0 0
        %1387 = vmatprep.mubr.bf16.mxu0 0
        %1388 = vmatmul.mubr.bf16.gmra.mxu0 %v1350
        %v1389 = vpop.f32.mrf.mxu0
        %v1390 = vadd.f32 0.0, %v1389
        %v1391 = vpop.f32.mrf.mxu0
        %v1392 = vpop.f32.mrf.mxu0
        %v1393 = vpop.f32.mrf.mxu0
        %1394 = vdwg.mxu0
        %v1395 = vadd.f32 %v1347, %v1390
        %v1396 = vlaneseq
        %v1397 = vshrl.u32 %v1396, 7
        %v1398 = vsub.s32 3, %v1397
        %v1399 = vrot.slane %v563, %v1398
        %v1400 = vadd.f32 %v1395, %v1399
        %v1401 = vld [vmem:[#allocation2] sm:$0xff]
        %v1402 = vadd.f32 %v1401, %v1400
        %v1403 = vsel %vm585, %v1402, 0.0
        %1404 = vadd.xlane.f32.xlu0 %v1403
        %v1405 = vpop.xlane.xlu0 %1404
        %v1406 = vrcp.pop 32.0
        %v1407 = vmul.f32 %v1405, %v1406
        %v1408 = vsub.f32 %v1402, %v1407
        %v1409 = vmul.f32 %v1408, %v1408
        %v1410 = vsel %vm585, %v1409, 0.0
        %1411 = vadd.xlane.f32.xlu0 %v1410
        %v1412 = vpop.xlane.xlu0 %1411
        %v1413 = vmul.f32 %v1412, %v1406
        %v1414 = vadd.f32 %v1413, 1e-05
        %v1415 = vrsqrt.pop %v1414
        %v1416 = vmul.f32 %v1408, %v1415
        %v1417 = vlaneseq
        %v1418 = vshrl.u32 %v1417, 7
        %v1419 = vsub.s32 4, %v1418
        %v1420 = vrot.slane %v563, %v1419
        %v1421 = vmul.f32 %v1416, %v1420
        %v1422 = vlaneseq
        %v1423 = vshrl.u32 %v1422, 7
        %v1424 = vsub.s32 5, %v1423
        %v1425 = vrot.slane %v563, %v1424
        %v1426 = vadd.f32 %v1421, %v1425
        %v1427 = vpack.c.bf16 %v1426, %v1426
        %v1428 = vld [vmem:[%s538] sm:$0xf]
        %v1429 = vld [vmem:[%s538 + $0x4] sm:$0xf]
        %v1430 = vld [vmem:[%s538 + $0x8] sm:$0xf]
        %v1431 = vld [vmem:[%s538 + $0xc] sm:$0xf]
        %v1433 = vlaneseq
        %v1434 = vshrl.u32 %v1433, 7
        %v1435 = vsub.s32 0, %v1434
        %v1436 = vrot.slane %v565, %v1435
        %v1442 = vunpack.c.l.b16 %v1428
        %v1443 = vunpack.c.l.b16 %v1429
        %v1444 = vunpack.c.l.b16 %v1430
        %v1445 = vunpack.c.l.b16 %v1431
        %v1446 = vpack.c.b16 %v1443, %v1442
        %v1447 = vpack.c.b16 %v1445, %v1444
        %v1451 = vsel %vm585, %v1427, 0
        %1453 = vmatprep.subr.bf16.mxu0 0
        %1454 = vmatpush1.bf16.msra.mxu0 0
        %1455 = vmatprep.subr.bf16.mxu0 0
        %1456 = vmatpush1.bf16.msra.mxu0 0
        %1457 = vmatprep.subr.bf16.mxu0 0
        %1458 = vmatpush1.bf16.msra.mxu0 0
        %1459 = vmatprep.subr.bf16.mxu0 0
        %1460 = vmatpush1.bf16.msra.mxu0 0
        %1461 = vmatprep.subr.bf16.mxu0 0
        %1462 = vmatpush1.bf16.msra.mxu0 0
        %1463 = vmatprep.subr.bf16.mxu0 0
        %1464 = vmatpush1.bf16.msra.mxu0 0
        %1465 = vmatprep.subr.bf16.mxu0 0
        %1466 = vmatpush1.bf16.msra.mxu0 %v1447
        %1467 = vmatprep.subr.bf16.mxu0 0
        %1468 = vmatpush1.bf16.msra.mxu0 %v1446
        %1469 = vmatprep.subr.bf16.mxu0 0
        %1470 = vmatpush2.bf16.msra.mxu0 0
        %1471 = vmatprep.subr.bf16.mxu0 0
        %1472 = vmatpush2.bf16.msra.mxu0 0
        %1473 = vmatprep.subr.bf16.mxu0 0
        %1474 = vmatpush2.bf16.msra.mxu0 0
        %1475 = vmatprep.subr.bf16.mxu0 0
        %1476 = vmatpush2.bf16.msra.mxu0 0
        %1477 = vmatprep.subr.bf16.mxu0 0
        %1478 = vmatpush2.bf16.msra.mxu0 0
        %1479 = vmatprep.subr.bf16.mxu0 0
        %1480 = vmatpush2.bf16.msra.mxu0 0
        %1481 = vmatprep.subr.bf16.mxu0 0
        %1482 = vmatpush2.bf16.msra.mxu0 0
        %1483 = vmatprep.subr.bf16.mxu0 0
        %1484 = vmatpush2.bf16.msra.mxu0 0
        %1485 = vmatprep.mubr.bf16.mxu0 0
        %1486 = vmatmul.mubr.bf16.gmra.mxu0 %v1451
        %v1487 = vpop.f32.mrf.mxu0
        %v1488 = vadd.f32 %v1436, %v1487
        %v1489 = vpop.f32.mrf.mxu0
        %v1490 = vpop.f32.mrf.mxu0
        %v1491 = vpop.f32.mrf.mxu0
        %1492 = vdwg.mxu0
        %v1493 = vmax.f32 %v1488, 0.0
        %v1494 = vpack.c.bf16 %v1493, %v1493
        %v1495 = vld [vmem:[%s543] sm:$0xf]
        %v1496 = vld [vmem:[%s543 + $0x4] sm:$0xf]
        %v1497 = vld [vmem:[%s543 + $0x8] sm:$0xf]
        %v1498 = vld [vmem:[%s543 + $0xc] sm:$0xf]
        %v1499 = vld [vmem:[%s543 + $0x10] sm:$0xf]
        %v1500 = vld [vmem:[%s543 + $0x14] sm:$0xf]
        %v1501 = vld [vmem:[%s543 + $0x18] sm:$0xf]
        %v1502 = vld [vmem:[%s543 + $0x1c] sm:$0xf]
        %v1503 = vlaneseq
        %v1504 = vshrl.u32 %v1503, 7
        %v1505 = vsub.s32 6, %v1504
        %v1506 = vrot.slane %v563, %v1505
        %v1515 = vunpack.c.l.b16 %v1495
        %v1516 = vunpack.c.l.b16 %v1496
        %v1517 = vunpack.c.l.b16 %v1497
        %v1518 = vunpack.c.l.b16 %v1498
        %v1519 = vunpack.c.l.b16 %v1499
        %v1520 = vunpack.c.l.b16 %v1500
        %v1521 = vunpack.c.l.b16 %v1501
        %v1522 = vunpack.c.l.b16 %v1502
        %v1523 = vpack.c.b16 %v1516, %v1515
        %v1524 = vpack.c.b16 %v1518, %v1517
        %v1525 = vpack.c.b16 %v1520, %v1519
        %v1526 = vpack.c.b16 %v1522, %v1521
        %vm1531 = vcmask 523264
        %v1533 = vsel %vm1531, %v1494, 0
        %1535 = vmatprep.subr.bf16.mxu0 0
        %1536 = vmatpush1.bf16.msra.mxu0 0
        %1537 = vmatprep.subr.bf16.mxu0 0
        %1538 = vmatpush1.bf16.msra.mxu0 0
        %1539 = vmatprep.subr.bf16.mxu0 0
        %1540 = vmatpush1.bf16.msra.mxu0 0
        %1541 = vmatprep.subr.bf16.mxu0 0
        %1542 = vmatpush1.bf16.msra.mxu0 0
        %1543 = vmatprep.subr.bf16.mxu0 0
        %1544 = vmatpush1.bf16.msra.mxu0 %v1526
        %1545 = vmatprep.subr.bf16.mxu0 0
        %1546 = vmatpush1.bf16.msra.mxu0 %v1525
        %1547 = vmatprep.subr.bf16.mxu0 0
        %1548 = vmatpush1.bf16.msra.mxu0 %v1524
        %1549 = vmatprep.subr.bf16.mxu0 0
        %1550 = vmatpush1.bf16.msra.mxu0 %v1523
        %1551 = vmatprep.subr.bf16.mxu0 0
        %1552 = vmatpush2.bf16.msra.mxu0 0
        %1553 = vmatprep.subr.bf16.mxu0 0
        %1554 = vmatpush2.bf16.msra.mxu0 0
        %1555 = vmatprep.subr.bf16.mxu0 0
        %1556 = vmatpush2.bf16.msra.mxu0 0
        %1557 = vmatprep.subr.bf16.mxu0 0
        %1558 = vmatpush2.bf16.msra.mxu0 0
        %1559 = vmatprep.subr.bf16.mxu0 0
        %1560 = vmatpush2.bf16.msra.mxu0 0
        %1561 = vmatprep.subr.bf16.mxu0 0
        %1562 = vmatpush2.bf16.msra.mxu0 0
        %1563 = vmatprep.subr.bf16.mxu0 0
        %1564 = vmatpush2.bf16.msra.mxu0 0
        %1565 = vmatprep.subr.bf16.mxu0 0
        %1566 = vmatpush2.bf16.msra.mxu0 0
        %1567 = vmatprep.mubr.bf16.mxu0 0
        %1568 = vmatmul.mubr.bf16.gmra.mxu0 %v1533
        %v1569 = vpop.f32.mrf.mxu0
        %v1570 = vadd.f32 %v1506, %v1569
        %v1571 = vpop.f32.mrf.mxu0
        %v1572 = vpop.f32.mrf.mxu0
        %v1573 = vpop.f32.mrf.mxu0
        %1574 = vdwg.mxu0
        %v1575 = vadd.f32 %v1426, %v1570
        %v1576 = vsel %vm585, %v1575, 0.0
        %1577 = vadd.xlane.f32.xlu0 %v1576
        %v1578 = vpop.xlane.xlu0 %1577
        %v1579 = vmul.f32 %v1578, %v1406
        %v1580 = vsub.f32 %v1575, %v1579
        %v1581 = vmul.f32 %v1580, %v1580
        %v1582 = vsel %vm585, %v1581, 0.0
        %1583 = vadd.xlane.f32.xlu0 %v1582
        %v1584 = vpop.xlane.xlu0 %1583
        %v1585 = vmul.f32 %v1584, %v1406
        %v1586 = vadd.f32 %v1585, 1e-05
        %v1587 = vrsqrt.pop %v1586
        %v1588 = vmul.f32 %v1580, %v1587
        %v1589 = vlaneseq
        %v1590 = vshrl.u32 %v1589, 7
        %v1591 = vsub.s32 7, %v1590
        %v1592 = vrot.slane %v563, %v1591
        %v1593 = vmul.f32 %v1588, %v1592
        %v1594 = vlaneseq
        %v1595 = vshrl.u32 %v1594, 7
        %v1596 = vsub.s32 0, %v1595
        %v1597 = vrot.slane %v564, %v1596
        %v1598 = vadd.f32 %v1593, %v1597
        %1599 = vst.msk [vmem:[#allocation2] sm:$0xff] %vm585, %v1598
        %p1600 = scmp.eq.s32.totalorder %s32, 1
        // Predicated region
        $region69: #{tpu_custom_call.1} parent=59 // pred_check
          %p1601 = pneg %p1600
        $region70: #{tpu_custom_call.1} parent=59 // pred_check_branch
          %1603 = sbr.rel (%p1601) target = $region72
        $region71: #{tpu_custom_call.1} parent=59 // pred_region
          %v1604 = vld [vmem:[#allocation2] sm:$0xff]
          %1605 = vst.msk [vmem:[%s511] sm:$0xff] %vm585, %v1604
        $region72: #{tpu_custom_call.1} parent=59 // pred_fallthru
          _
        %s1606 = sand.u32 %s307, 1
        %s1607 = scalar_lea.sflag [#allocation8], %s1606
        %s1608 = sand.u32 %s307, 1
        %s1609 = smul.addr %s1608, 8
        %s1610 = scalar_lea.vmem [#allocation9], %s1609
        // Predicated region
        $region73: #{tpu_custom_call.1} parent=59 // pred_check
          %p1611 = pneg %p317
        $region74: #{tpu_custom_call.1} parent=59 // pred_check_branch
          %1613 = sbr.rel (%p1611) target = $region76
        $region75: #{tpu_custom_call.1} parent=59 // pred_region
          %s1615 = ssub.s32 128, 128
          %1616 = vsyncadd %s1607, %s1615
          %s1617 = smul.addr %s31, 128
          %s1618 = scalar_lea.hbm %s10, %s1617
          %s1620 = sshll.u32 %s1610, 4
          %s1621 = int_to_ptr.vmem [resolvable:$true] %s1620
          %1623 = dma.vmem_to_hbm [thread:$0]  %s1621, 128, %s1618, %s1607
        $region76: #{tpu_custom_call.1} parent=59 // pred_fallthru
          _
      $region60: #{tpu_custom_call.1} parent=5 // pred_fallthru
        _
      %p1624 = scmp.le.s32.totalorder 2, %s22
      // Predicated region
      $region77: #{tpu_custom_call.1} parent=5 // pred_check
        %p1625 = pneg %p1624
      $region78: #{tpu_custom_call.1} parent=5 // pred_check_branch
        %1627 = sbr.rel (%p1625) target = $region80
      $region79: #{tpu_custom_call.1} parent=5 // pred_region
        %s1628 = ssub.s32 %s22, 2
        // Predicated region
        $region81: #{tpu_custom_call.1} parent=79 // pred_check
          %p1629 = pneg %p323
        $region82: #{tpu_custom_call.1} parent=79 // pred_check_branch
          %1631 = sbr.rel (%p1629) target = $region84
        $region83: #{tpu_custom_call.1} parent=79 // pred_region
          %s1632 = sand.u32 %s308, 1
          %s1633 = scalar_lea.sflag [#allocation8], %s1632
          %s1634 = sand.u32 %s308, 1
          %s1635 = smul.addr %s1634, 8
          %s1636 = scalar_lea.vmem [#allocation9], %s1635
          %1637 = dma.done %s1633, 128
        $region84: #{tpu_custom_call.1} parent=79 // pred_fallthru
          _
      $region80: #{tpu_custom_call.1} parent=5 // pred_fallthru
        _
    $region6: #{tpu_custom_call.1} parent=1 // loop_footer
      %s26 = sadd.s32 1, %s22
    $region7: #{tpu_custom_call.1} parent=1 // loop_footer_branch
      %21 = sbr.rel target = $region3
    $region8: #{tpu_custom_call.1} parent=1 // loop_exit
      _
    %1638 = vsyncpa [#allocation7], 1
    %s1639 = scalar_lea.sflag [#allocation7], 1
    %1640 = vsyncpa %s1639, 1
    %1641 = vsyncpa [#allocation8], 1
    %s1642 = scalar_lea.sflag [#allocation8], 1
    %1643 = vsyncpa %s1642, 1

</llo_original>
